<compile_context>
chip_gen: v7x
topology: tpu7x:2x2x1
jax: 0.10.0
libtpu: 0.0.40
codegen_flags: <defaults>
</compile_context>

<pallas_src>
import numpy as np
import jax
import jax.numpy as jnp
from jax.experimental import pallas as pl
from jax.experimental.pallas import tpu as pltpu

# Module-level constants used by the original file.
K1 = (3, 3)
K2 = (3, 3)
S1 = (2, 2)
S2 = (2, 2)
D1 = 8
D2 = 16

BN_EPS = 1e-5
LANE = 128


def _round_up(n, m):
    return ((n + m - 1) // m) * m


# ----------------------------- parameter-setup glue -----------------------------
def _tconv_matrix(w, stride, h_in, w_in, h_out, w_out):
    """Dense matrix M with  x_flat @ M == ConvTranspose2d(x)  (both NCHW-flat).

    out[b, co, ih*s+kh, iw*s+kw] += x[b, ci, ih, iw] * w[ci, co, kh, kw]
    (padding=0, dilation=1; output_padding rows/cols get no contribution,
    matching PyTorch's output_size= handling here).
    """
    cin, cout, kh, kw = w.shape
    m = np.zeros((cin * h_in * w_in, cout * h_out * w_out), dtype=np.float32)
    for ci in range(cin):
        for ih in range(h_in):
            for iw in range(w_in):
                row = (ci * h_in + ih) * w_in + iw
                for co in range(cout):
                    for dh in range(kh):
                        for dw in range(kw):
                            oh = ih * stride[0] + dh
                            ow = iw * stride[1] + dw
                            col = (co * h_out + oh) * w_out + ow
                            m[row, col] += w[ci, co, dh, dw]
    return m


def build_params(raw, *, encoder_dim, n_classes, height, width, l1h, l2h, l2w):
    """Pack / pad / cast the PyTorch-layout parameters for the kernel."""
    f32 = np.float32
    h1 = int(raw["w1"].shape[1])
    f2 = D2 * l2h * l2w
    hw1 = l1h * l1h                 # NOTE: module uses encoder_l1height for BOTH dims
    c1hw = D1 * hw1
    out_feat = 1 * height * width
    in_feat = encoder_dim + n_classes

    XCP = max(16, _round_up(in_feat, 16))      # bf16 sublane packing
    H1P = _round_up(h1, LANE)
    F2P = _round_up(f2, LANE)
    C1P = _round_up(c1hw, LANE)
    OUTP = _round_up(out_feat, LANE)
    WMAX = max(H1P, F2P, C1P, OUTP)

    # fc1 weight: one stacked [x; c] matrix, zero-padded rows/cols.
    w1p = np.zeros((XCP, H1P), f32)
    w1p[:in_feat, :h1] = np.asarray(raw["w1"], f32)

    # fc2 weight.
    w2p = np.zeros((H1P, F2P), f32)
    w2p[:h1, :f2] = np.asarray(raw["w2"], f32)

    # Packed per-feature vectors (one operand, statically sliced in-kernel):
    #   row 0: fc1 bias          row 1: bn1 gamma       row 2: bn1 beta
    #   row 3: softmax mask      row 4: fc2 bias        row 5: bn2 gamma
    #   row 6: bn2 beta          row 7: ct1 bias (broadcast over H1*W1)
    #   row 8: ct2 bias (broadcast over H*W)
    #   row 9: bn3 gamma (per channel)   row 10: bn3 beta (per channel)
    vp = np.zeros((11, WMAX), f32)
    vp[0, :h1] = np.asarray(raw["b1"], f32)
    vp[1, :h1] = np.asarray(raw["g1"], f32)
    vp[2, :h1] = np.asarray(raw["be1"], f32)
    vp[3, :h1] = 1.0
    vp[4, :f2] = np.asarray(raw["b2"], f32)
    vp[5, :f2] = np.asarray(raw["g2"], f32)
    vp[6, :f2] = np.asarray(raw["be2"], f32)
    vp[7, :c1hw] = np.repeat(np.asarray(raw["bct1"], f32), hw1)
    vp[8, :out_feat] = np.repeat(np.asarray(raw["bct2"], f32), height * width)
    vp[9, :D1] = np.asarray(raw["g3"], f32)
    vp[10, :D1] = np.asarray(raw["be3"], f32)

    # Dense transposed-conv matrices (big DMAs -> overlapped in-kernel).
    m1 = np.zeros((F2P, C1P), f32)
    m1[:f2, :c1hw] = _tconv_matrix(np.asarray(raw["wct1"], f32), S2, l2h, l2w, l1h, l1h)
    m2 = np.zeros((C1P, OUTP), f32)
    m2[:c1hw, :out_feat] = _tconv_matrix(np.asarray(raw["wct2"], f32), S1, l1h, l1h, height, width)

    # 0/1 channel selection (padded rows stay zero so padding never enters
    # the per-channel statistics).  Kept narrow (D1 columns): lane-padding to
    # 128 would cost 16x DMA bytes for no measurable VPU gain.
    sel = np.zeros((C1P, D1), f32)
    for co in range(D1):
        sel[co * hw1:(co + 1) * hw1, co] = 1.0
    selT = np.ascontiguousarray(sel.T)

    return dict(
        w1=jnp.asarray(w1p, jnp.bfloat16),
        w2=jnp.asarray(w2p, jnp.bfloat16),
        vp=jnp.asarray(vp),
        m1=jnp.asarray(m1, jnp.bfloat16),
        m2=jnp.asarray(m2, jnp.bfloat16),
        sel=jnp.asarray(sel), selT=jnp.asarray(selT),
        g4=float(np.asarray(raw["g4"], f32)[0]),
        be4=float(np.asarray(raw["be4"], f32)[0]),
        xcp=XCP, in_feat=in_feat, hw1=hw1, out_feat=out_feat,
        height=height, width=width,
    )


# ----------------------------- the Pallas kernel -----------------------------
def _decoder_kernel(scal_ref,            # SMEM (4,): inv_n1, inv_n2, g4, be4
                    xc_ref, w1_ref, vp_ref, w2_ref, sel_ref, selT_ref,
                    m1_hbm, m2_hbm,      # pl.ANY (HBM) - DMA'd manually
                    out_ref,
                    m1_vmem, m2_vmem, dma_sem):
    f32 = jnp.float32
    bf16 = jnp.bfloat16

    H1P = w1_ref.shape[1]
    F2P = w2_ref.shape[1]
    C1P = m1_vmem.shape[1]
    OUTP = m2_vmem.shape[1]
    NCH = sel_ref.shape[1]

    # Kick off the big tconv-weight fetches; they overlap fc1/fc2/softmax.
    cp1 = pltpu.make_async_copy(m1_hbm, m1_vmem, dma_sem.at[0])
    cp2 = pltpu.make_async_copy(m2_hbm, m2_vmem, dma_sem.at[1])
    cp1.start()
    cp2.start()

    # SMEM scalar reads before any DMA wait (keeps sst->sld forwarding).
    inv_n1 = scal_ref[0]
    inv_n2 = scal_ref[1]
    g4 = scal_ref[2]
    be4 = scal_ref[3]

    # ---- fc1: Linear -> BatchNorm1d (batch stats) -> Softmax(dim=1)
    h = (jnp.dot(xc_ref[...].astype(bf16), w1_ref[...], preferred_element_type=f32)
         + vp_ref[0:1, 0:H1P])
    mu = jnp.mean(h, axis=0, keepdims=True)
    var = jnp.mean((h - mu) ** 2, axis=0, keepdims=True)
    scale = vp_ref[1:2, 0:H1P] * jax.lax.rsqrt(var + BN_EPS)
    shift = vp_ref[2:3, 0:H1P] - mu * scale
    h = h * scale + shift
    # masked softmax over the (lane-padded) feature axis
    h = h - jnp.max(h, axis=1, keepdims=True)
    e = jnp.exp(h) * vp_ref[3:4, 0:H1P]
    den = jnp.sum(e, axis=1, keepdims=True)
    inv = pl.reciprocal(den, approx=True)
    inv = inv * (2.0 - den * inv)          # one Newton step -> ~f32 accuracy
    h = e * inv

    # ---- fc2: Linear -> BatchNorm1d -> ReLU
    h = (jnp.dot(h.astype(bf16), w2_ref[...], preferred_element_type=f32)
         + vp_ref[4:5, 0:F2P])
    mu = jnp.mean(h, axis=0, keepdims=True)
    var = jnp.mean((h - mu) ** 2, axis=0, keepdims=True)
    scale = vp_ref[5:6, 0:F2P] * jax.lax.rsqrt(var + BN_EPS)
    shift = vp_ref[6:7, 0:F2P] - mu * scale
    h = jnp.maximum(h * scale + shift, 0.0)

    # ---- ct1: ConvTranspose2d (dense matmul) -> BatchNorm2d (per channel) -> ReLU
    cp1.wait()
    h = (jnp.dot(h.astype(bf16), m1_vmem[...], preferred_element_type=f32)
         + vp_ref[7:8, 0:C1P])
    ssum = jnp.dot(jnp.sum(h, axis=0, keepdims=True), sel_ref[...],
                   preferred_element_type=f32)                         # (1, NCH)
    ssq = jnp.dot(jnp.sum(h * h, axis=0, keepdims=True), sel_ref[...],
                  preferred_element_type=f32)                          # (1, NCH)
    ch_mu = ssum * inv_n1
    ch_var = jnp.maximum(ssq * inv_n1 - ch_mu * ch_mu, 0.0)            # clamp
    sc_ch = vp_ref[9:10, 0:NCH] * jax.lax.rsqrt(ch_var + BN_EPS)
    sh_ch = vp_ref[10:11, 0:NCH] - ch_mu * sc_ch
    scale_full = jnp.dot(sc_ch, selT_ref[...], preferred_element_type=f32)
    shift_full = jnp.dot(sh_ch, selT_ref[...], preferred_element_type=f32)
    h = jnp.maximum(h * scale_full + shift_full, 0.0)

    # ---- ct2: ConvTranspose2d (dense matmul) -> BatchNorm2d(1) -> ReLU
    cp2.wait()
    h = (jnp.dot(h.astype(bf16), m2_vmem[...], preferred_element_type=f32)
         + vp_ref[8:9, 0:OUTP])
    s = jnp.sum(jnp.sum(h, axis=1, keepdims=True), axis=0, keepdims=True) * inv_n2
    q = jnp.sum(jnp.sum(h * h, axis=1, keepdims=True), axis=0, keepdims=True) * inv_n2
    v2 = jnp.maximum(q - s * s, 0.0)                                   # clamp
    sc2 = g4 * jax.lax.rsqrt(v2 + BN_EPS)
    sh2 = be4 - s * sc2
    out_ref[...] = jnp.maximum(h * sc2 + sh2, 0.0)


# ----------------------------- wrapper -----------------------------
def decoder_forward(x, c, P):
    B = x.shape[0]
    out_feat = P["out_feat"]
    F2P, C1P = P["m1"].shape
    OUTP = P["m2"].shape[1]

    xc = jnp.concatenate([x.astype(jnp.float32), c.astype(jnp.float32)], axis=1)
    pad = P["xcp"] - xc.shape[1]
    if pad > 0:
        xc = jnp.pad(xc, ((0, 0), (0, pad)))

    # Batch-dependent scalars go to SMEM (no value-driven recompiles).
    scal = jnp.array([1.0 / float(B * P["hw1"]),      # per-channel BN count
                      1.0 / float(B * out_feat),      # BN2d(1) count
                      P["g4"], P["be4"]], jnp.float32)

    vmem = pl.BlockSpec(memory_space=pltpu.MemorySpace.VMEM)
    smem = pl.BlockSpec(memory_space=pltpu.MemorySpace.SMEM)
    hbm = pl.BlockSpec(memory_space=pl.ANY)   # m1/m2: copied manually, overlapped

    out = pl.pallas_call(
        _decoder_kernel,
        out_shape=jax.ShapeDtypeStruct((B, OUTP), jnp.float32),
        in_specs=[smem, vmem, vmem, vmem, vmem, vmem, vmem, hbm, hbm],
        out_specs=vmem,
        scratch_shapes=[
            pltpu.VMEM((F2P, C1P), jnp.bfloat16),   # m1 landing buffer
            pltpu.VMEM((C1P, OUTP), jnp.bfloat16),  # m2 landing buffer
            pltpu.SemaphoreType.DMA((2,)),
        ],
        compiler_params=pltpu.CompilerParams(
            vmem_limit_bytes=32 * 1024 * 1024),     # total footprint ~2 MiB at B=2
    )(scal, xc, P["w1"], P["vp"], P["w2"], P["sel"], P["selT"], P["m1"], P["m2"])

    if OUTP != out_feat:
        out = out[:, :out_feat]
    # F.interpolate(..., size=(H, W), mode='bilinear') with matching size is an
    # exact identity -> no resample op, just reshape to NCHW.
    return out.reshape(B, 1, P["height"], P["width"])


# ----------------------------- pure-JAX references -----------------------------
def _reference_packed(xc, P, inv_n1, inv_n2):
    """Same packed/padded math as the kernel (exact divides) - tight check."""
    f32, bf16 = jnp.float32, jnp.bfloat16
    vp = P["vp"]
    H1P = P["w1"].shape[1]
    F2P = P["w2"].shape[1]
    C1P = P["m1"].shape[1]
    NCH = P["sel"].shape[1]

    h = jnp.dot(xc.astype(bf16), P["w1"], preferred_element_type=f32) + vp[0:1, :H1P]
    mu = jnp.mean(h, axis=0, keepdims=True)
    var = jnp.mean((h - mu) ** 2, axis=0, keepdims=True)
    sc = vp[1:2, :H1P] * jax.lax.rsqrt(var + BN_EPS)
    h = h * sc + (vp[2:3, :H1P] - mu * sc)
    e = jnp.exp(h - jnp.max(h, axis=1, keepdims=True)) * vp[3:4, :H1P]
    h = e / jnp.sum(e, axis=1, keepdims=True)

    h = jnp.dot(h.astype(bf16), P["w2"], preferred_element_type=f32) + vp[4:5, :F2P]
    mu = jnp.mean(h, axis=0, keepdims=True)
    var = jnp.mean((h - mu) ** 2, axis=0, keepdims=True)
    sc = vp[5:6, :F2P] * jax.lax.rsqrt(var + BN_EPS)
    h = jnp.maximum(h * sc + (vp[6:7, :F2P] - mu * sc), 0.0)

    h = jnp.dot(h.astype(bf16), P["m1"], preferred_element_type=f32) + vp[7:8, :C1P]
    ch_mu = jnp.dot(jnp.sum(h, axis=0, keepdims=True), P["sel"]) * inv_n1
    ch_ms = jnp.dot(jnp.sum(h * h, axis=0, keepdims=True), P["sel"]) * inv_n1
    ch_var = jnp.maximum(ch_ms - ch_mu * ch_mu, 0.0)
    sc_ch = vp[9:10, :NCH] * jax.lax.rsqrt(ch_var + BN_EPS)
    sh_ch = vp[10:11, :NCH] - ch_mu * sc_ch
    h = jnp.maximum(h * jnp.dot(sc_ch, P["selT"]) + jnp.dot(sh_ch, P["selT"]), 0.0)

    OUTP = P["m2"].shape[1]
    h = jnp.dot(h.astype(bf16), P["m2"], preferred_element_type=f32) + vp[8:9, :OUTP]
    mu = jnp.sum(h) * inv_n2
    var = jnp.maximum(jnp.sum(h * h) * inv_n2 - mu * mu, 0.0)
    sc2 = P["g4"] * jax.lax.rsqrt(var + BN_EPS)
    return jnp.maximum(h * sc2 + (P["be4"] - mu * sc2), 0.0)


def _reference_raw(x, c, raw, *, height, width, l1h, l2h, l2w):
    """Plain f32, unpadded math straight from the PyTorch-layout params."""
    B = x.shape[0]
    hw1 = l1h * l1h
    m1 = jnp.asarray(_tconv_matrix(np.asarray(raw["wct1"], np.float32), S2, l2h, l2w, l1h, l1h))
    m2 = jnp.asarray(_tconv_matrix(np.asarray(raw["wct2"], np.float32), S1, l1h, l1h, height, width))

    def bn1d(h, g, b):
        mu = jnp.mean(h, axis=0, keepdims=True)
        var = jnp.mean((h - mu) ** 2, axis=0, keepdims=True)
        return (h - mu) * jax.lax.rsqrt(var + BN_EPS) * g + b

    h = jnp.concatenate([x, c], axis=1) @ raw["w1"] + raw["b1"]
    h = bn1d(h, raw["g1"], raw["be1"])
    h = jax.nn.softmax(h, axis=1)
    h = h @ raw["w2"] + raw["b2"]
    h = jnp.maximum(bn1d(h, raw["g2"], raw["be2"]), 0.0)

    h = h @ m1 + jnp.repeat(raw["bct1"], hw1)[None, :]
    hc = h.reshape(B, D1, hw1)
    mu = jnp.mean(hc, axis=(0, 2), keepdims=True)
    var = jnp.mean((hc - mu) ** 2, axis=(0, 2), keepdims=True)
    hc = (hc - mu) * jax.lax.rsqrt(var + BN_EPS) * raw["g3"].reshape(1, D1, 1) \
        + raw["be3"].reshape(1, D1, 1)
    h = jnp.maximum(hc, 0.0).reshape(B, D1 * hw1)

    h = h @ m2 + raw["bct2"][0]
    mu = jnp.mean(h)
    var = jnp.mean((h - mu) ** 2)
    h = jnp.maximum((h - mu) * jax.lax.rsqrt(var + BN_EPS) * raw["g4"][0] + raw["be4"][0], 0.0)
    return h.reshape(B, 1, height, width)


# ----------------------------- demo / self-check -----------------------------
if __name__ == "__main__":
    # Shapes consistent with an encoder using K/S above:
    #   image 16x16 -> conv(K1,S1) -> 7x7 -> conv(K2,S2) -> 3x3
    B = 2
    height = width = 16
    encoder_dim = 7
    n_classes = 4
    l1h = 7                      # encoder_l1height (used for BOTH ct1 output dims)
    l2h = l2w = 3

    h1 = encoder_dim * 2         # 14
    f2 = D2 * l2h * l2w          # 144

    key = jax.random.PRNGKey(0)
    ks = jax.random.split(key, 20)

    def nrm(k, shape, scale=0.2):
        return scale * jax.random.normal(k, shape, jnp.float32)

    raw = dict(
        w1=nrm(ks[0], (encoder_dim + n_classes, h1)),
        b1=nrm(ks[1], (h1,), 0.1),
        g1=1.0 + nrm(ks[2], (h1,), 0.1), be1=nrm(ks[3], (h1,), 0.1),
        w2=nrm(ks[4], (h1, f2)),
        b2=nrm(ks[5], (f2,), 0.1),
        g2=1.0 + nrm(ks[6], (f2,), 0.1), be2=nrm(ks[7], (f2,), 0.1),
        wct1=nrm(ks[8], (D2, D1, K2[0], K2[1])),
        bct1=nrm(ks[9], (D1,), 0.1),
        g3=1.0 + nrm(ks[10], (D1,), 0.1), be3=nrm(ks[11], (D1,), 0.1),
        wct2=nrm(ks[12], (D1, 1, K1[0], K1[1])),
        bct2=nrm(ks[13], (1,), 0.1),
        g4=1.0 + nrm(ks[14], (1,), 0.1), be4=nrm(ks[15], (1,), 0.1),
    )

    P = build_params(raw, encoder_dim=encoder_dim, n_classes=n_classes,
                     height=height, width=width, l1h=l1h, l2h=l2h, l2w=l2w)

    x = jax.random.normal(ks[16], (B, encoder_dim), jnp.float32)
    c = jax.nn.one_hot(jnp.array([1, 3]), n_classes, dtype=jnp.float32)

    out = decoder_forward(x, c, P)
    out = jax.block_until_ready(out)

    assert out.shape == (B, 1, height, width), out.shape
    assert bool(jnp.all(jnp.isfinite(out)))

    # (1) tight check: kernel vs identical packed/bf16 math in plain JAX
    inv_n1 = 1.0 / float(B * P["hw1"])
    inv_n2 = 1.0 / float(B * P["out_feat"])
    xc = jnp.pad(jnp.concatenate([x, c], axis=1),
                 ((0, 0), (0, P["xcp"] - (encoder_dim + n_classes))))
    ref_p = _reference_packed(xc, P, inv_n1, inv_n2)
    ref_p = ref_p[:, :P["out_feat"]].reshape(B, 1, height, width)
    assert bool(jnp.allclose(out, ref_p, atol=1e-2, rtol=1e-2)), \
        "kernel vs packed reference mismatch"

    # (2) loose check: kernel vs plain f32, unpadded reference (validates the
    #     padding / packing / bf16 glue; slack covers bf16 weight rounding)
    ref_r = _reference_raw(x, c, raw, height=height, width=width,
                           l1h=l1h, l2h=l2h, l2w=l2w)
    assert bool(jnp.allclose(out, ref_r, atol=1e-1, rtol=1e-1)), \
        "kernel vs f32 raw reference mismatch"

    print("KERNEL_OK")
</pallas_src>

<mosaic_0001>
module attributes {stable_mosaic.version = 11 : i64} {
  func.func @_decoder_kernel(%arg0: memref<4xf32, #tpu.memory_space<smem>>, %arg1: memref<2x16xf32, #tpu.memory_space<vmem>>, %arg2: memref<16x128xbf16, #tpu.memory_space<vmem>>, %arg3: memref<11x512xf32, #tpu.memory_space<vmem>>, %arg4: memref<128x256xbf16, #tpu.memory_space<vmem>>, %arg5: memref<512x8xf32, #tpu.memory_space<vmem>>, %arg6: memref<8x512xf32, #tpu.memory_space<vmem>>, %arg7: memref<256x512xbf16, #tpu.memory_space<any>>, %arg8: memref<512x256xbf16, #tpu.memory_space<any>>, %arg9: memref<2x256xf32, #tpu.memory_space<vmem>>, %arg10: memref<256x512xbf16, #tpu.memory_space<vmem>>, %arg11: memref<512x256xbf16, #tpu.memory_space<vmem>>, %arg12: memref<2x!tpu.dma_semaphore, #tpu.memory_space<semaphore_mem>>) attributes {dimension_semantics = [], scalar_prefetch = 0 : i64, scratch_operands = 3 : i64, tpu.core_type = #tpu.core_type<tc>} {
    %c0_i32 = arith.constant 0 : i32
    %0 = tpu.memref_slice %arg12[%c0_i32] : memref<2x!tpu.dma_semaphore, #tpu.memory_space<semaphore_mem>> -> memref<1x!tpu.dma_semaphore, #tpu.memory_space<semaphore_mem>>
    %1 = tpu.memref_squeeze %0 : memref<1x!tpu.dma_semaphore, #tpu.memory_space<semaphore_mem>> -> memref<!tpu.dma_semaphore, #tpu.memory_space<semaphore_mem>>
    tpu.enqueue_dma source(%arg7 : memref<256x512xbf16, #tpu.memory_space<any>>) target(%arg10 : memref<256x512xbf16, #tpu.memory_space<vmem>>) target_semaphore(%1 : memref<!tpu.dma_semaphore, #tpu.memory_space<semaphore_mem>>)
    %c1_i32 = arith.constant 1 : i32
    %2 = tpu.memref_slice %arg12[%c1_i32] : memref<2x!tpu.dma_semaphore, #tpu.memory_space<semaphore_mem>> -> memref<1x!tpu.dma_semaphore, #tpu.memory_space<semaphore_mem>>
    %3 = tpu.memref_squeeze %2 : memref<1x!tpu.dma_semaphore, #tpu.memory_space<semaphore_mem>> -> memref<!tpu.dma_semaphore, #tpu.memory_space<semaphore_mem>>
    tpu.enqueue_dma source(%arg8 : memref<512x256xbf16, #tpu.memory_space<any>>) target(%arg11 : memref<512x256xbf16, #tpu.memory_space<vmem>>) target_semaphore(%3 : memref<!tpu.dma_semaphore, #tpu.memory_space<semaphore_mem>>)
    %c0 = arith.constant 0 : index
    %4 = memref.load %arg0[%c0] : memref<4xf32, #tpu.memory_space<smem>>
    %c1 = arith.constant 1 : index
    %5 = memref.load %arg0[%c1] : memref<4xf32, #tpu.memory_space<smem>>
    %c2 = arith.constant 2 : index
    %6 = memref.load %arg0[%c2] : memref<4xf32, #tpu.memory_space<smem>>
    %c3 = arith.constant 3 : index
    %7 = memref.load %arg0[%c3] : memref<4xf32, #tpu.memory_space<smem>>
    %c0_0 = arith.constant 0 : index
    %c0_1 = arith.constant 0 : index
    %8 = vector.load %arg1[%c0_0, %c0_1] : memref<2x16xf32, #tpu.memory_space<vmem>>, vector<2x16xf32>
    %9 = arith.truncf %8 : vector<2x16xf32> to vector<2x16xbf16>
    %c0_2 = arith.constant 0 : index
    %c0_3 = arith.constant 0 : index
    %10 = vector.load %arg2[%c0_2, %c0_3] : memref<16x128xbf16, #tpu.memory_space<vmem>>, vector<16x128xbf16>
    %cst = arith.constant dense<0.000000e+00> : vector<2x128xf32>
    %11 = tpu.matmul %9, %10, %cst {dimension_numbers = #tpu.dot_dimension_numbers<[1], [0], [0], [1], [0, 0, 1, 1], [], []>} : vector<2x16xbf16>, vector<16x128xbf16>, vector<2x128xf32> -> vector<2x128xf32>
    %c0_4 = arith.constant 0 : index
    %c0_5 = arith.constant 0 : index
    %12 = vector.load %arg3[%c0_4, %c0_5] : memref<11x512xf32, #tpu.memory_space<vmem>>, vector<1x128xf32>
    %13 = vector.broadcast %12 : vector<1x128xf32> to vector<2x128xf32>
    %14 = arith.addf %11, %13 : vector<2x128xf32>
    %cst_6 = arith.constant dense<0.000000e+00> : vector<128xf32>
    %15 = vector.multi_reduction <add>, %14, %cst_6 [0] : vector<2x128xf32> to vector<128xf32>
    %16 = vector.shape_cast %15 : vector<128xf32> to vector<1x128xf32>
    %cst_7 = arith.constant 2.000000e+00 : f32
    %17 = vector.broadcast %cst_7 : f32 to vector<1x128xf32>
    %18 = arith.divf %16, %17 : vector<1x128xf32>
    %19 = vector.broadcast %18 : vector<1x128xf32> to vector<2x128xf32>
    %20 = arith.subf %14, %19 : vector<2x128xf32>
    %21 = arith.mulf %20, %20 : vector<2x128xf32>
    %cst_8 = arith.constant dense<0.000000e+00> : vector<128xf32>
    %22 = vector.multi_reduction <add>, %21, %cst_8 [0] : vector<2x128xf32> to vector<128xf32>
    %23 = vector.shape_cast %22 : vector<128xf32> to vector<1x128xf32>
    %cst_9 = arith.constant 2.000000e+00 : f32
    %24 = vector.broadcast %cst_9 : f32 to vector<1x128xf32>
    %25 = arith.divf %23, %24 : vector<1x128xf32>
    %c1_10 = arith.constant 1 : index
    %c0_11 = arith.constant 0 : index
    %26 = vector.load %arg3[%c1_10, %c0_11] : memref<11x512xf32, #tpu.memory_space<vmem>>, vector<1x128xf32>
    %cst_12 = arith.constant 9.99999974E-6 : f32
    %27 = vector.broadcast %cst_12 : f32 to vector<1x128xf32>
    %28 = arith.addf %25, %27 : vector<1x128xf32>
    %29 = math.rsqrt %28 : vector<1x128xf32>
    %30 = arith.mulf %26, %29 : vector<1x128xf32>
    %c2_13 = arith.constant 2 : index
    %c0_14 = arith.constant 0 : index
    %31 = vector.load %arg3[%c2_13, %c0_14] : memref<11x512xf32, #tpu.memory_space<vmem>>, vector<1x128xf32>
    %32 = arith.mulf %18, %30 : vector<1x128xf32>
    %33 = arith.subf %31, %32 : vector<1x128xf32>
    %34 = vector.broadcast %30 : vector<1x128xf32> to vector<2x128xf32>
    %35 = arith.mulf %14, %34 : vector<2x128xf32>
    %36 = vector.broadcast %33 : vector<1x128xf32> to vector<2x128xf32>
    %37 = arith.addf %35, %36 : vector<2x128xf32>
    %cst_15 = arith.constant dense<0xFF800000> : vector<2xf32>
    %38 = vector.multi_reduction <maximumf>, %37, %cst_15 [1] : vector<2x128xf32> to vector<2xf32>
    %39 = vector.shape_cast %38 : vector<2xf32> to vector<2x1xf32>
    %40 = vector.broadcast %39 : vector<2x1xf32> to vector<2x128xf32>
    %41 = arith.subf %37, %40 : vector<2x128xf32>
    %42 = math.exp %41 : vector<2x128xf32>
    %c3_16 = arith.constant 3 : index
    %c0_17 = arith.constant 0 : index
    %43 = vector.load %arg3[%c3_16, %c0_17] : memref<11x512xf32, #tpu.memory_space<vmem>>, vector<1x128xf32>
    %44 = vector.broadcast %43 : vector<1x128xf32> to vector<2x128xf32>
    %45 = arith.mulf %42, %44 : vector<2x128xf32>
    %cst_18 = arith.constant dense<0.000000e+00> : vector<2xf32>
    %46 = vector.multi_reduction <add>, %45, %cst_18 [1] : vector<2x128xf32> to vector<2xf32>
    %47 = vector.shape_cast %46 : vector<2xf32> to vector<2x1xf32>
    %48 = tpu.reciprocal %47 {approx = true} : vector<2x1xf32> -> vector<2x1xf32>
    %49 = arith.mulf %47, %48 : vector<2x1xf32>
    %cst_19 = arith.constant 2.000000e+00 : f32
    %50 = vector.broadcast %cst_19 : f32 to vector<2x1xf32>
    %51 = arith.subf %50, %49 : vector<2x1xf32>
    %52 = arith.mulf %48, %51 : vector<2x1xf32>
    %53 = vector.broadcast %52 : vector<2x1xf32> to vector<2x128xf32>
    %54 = arith.mulf %45, %53 : vector<2x128xf32>
    %55 = arith.truncf %54 : vector<2x128xf32> to vector<2x128xbf16>
    %c0_20 = arith.constant 0 : index
    %c0_21 = arith.constant 0 : index
    %56 = vector.load %arg4[%c0_20, %c0_21] : memref<128x256xbf16, #tpu.memory_space<vmem>>, vector<128x256xbf16>
    %cst_22 = arith.constant dense<0.000000e+00> : vector<2x256xf32>
    %57 = tpu.matmul %55, %56, %cst_22 {dimension_numbers = #tpu.dot_dimension_numbers<[1], [0], [0], [1], [0, 0, 1, 1], [], []>} : vector<2x128xbf16>, vector<128x256xbf16>, vector<2x256xf32> -> vector<2x256xf32>
    %c4 = arith.constant 4 : index
    %c0_23 = arith.constant 0 : index
    %58 = vector.load %arg3[%c4, %c0_23] : memref<11x512xf32, #tpu.memory_space<vmem>>, vector<1x256xf32>
    %59 = vector.broadcast %58 : vector<1x256xf32> to vector<2x256xf32>
    %60 = arith.addf %57, %59 : vector<2x256xf32>
    %cst_24 = arith.constant dense<0.000000e+00> : vector<256xf32>
    %61 = vector.multi_reduction <add>, %60, %cst_24 [0] : vector<2x256xf32> to vector<256xf32>
    %62 = vector.shape_cast %61 : vector<256xf32> to vector<1x256xf32>
    %cst_25 = arith.constant 2.000000e+00 : f32
    %63 = vector.broadcast %cst_25 : f32 to vector<1x256xf32>
    %64 = arith.divf %62, %63 : vector<1x256xf32>
    %65 = vector.broadcast %64 : vector<1x256xf32> to vector<2x256xf32>
    %66 = arith.subf %60, %65 : vector<2x256xf32>
    %67 = arith.mulf %66, %66 : vector<2x256xf32>
    %cst_26 = arith.constant dense<0.000000e+00> : vector<256xf32>
    %68 = vector.multi_reduction <add>, %67, %cst_26 [0] : vector<2x256xf32> to vector<256xf32>
    %69 = vector.shape_cast %68 : vector<256xf32> to vector<1x256xf32>
    %cst_27 = arith.constant 2.000000e+00 : f32
    %70 = vector.broadcast %cst_27 : f32 to vector<1x256xf32>
    %71 = arith.divf %69, %70 : vector<1x256xf32>
    %c5 = arith.constant 5 : index
    %c0_28 = arith.constant 0 : index
    %72 = vector.load %arg3[%c5, %c0_28] : memref<11x512xf32, #tpu.memory_space<vmem>>, vector<1x256xf32>
    %cst_29 = arith.constant 9.99999974E-6 : f32
    %73 = vector.broadcast %cst_29 : f32 to vector<1x256xf32>
    %74 = arith.addf %71, %73 : vector<1x256xf32>
    %75 = math.rsqrt %74 : vector<1x256xf32>
    %76 = arith.mulf %72, %75 : vector<1x256xf32>
    %c6 = arith.constant 6 : index
    %c0_30 = arith.constant 0 : index
    %77 = vector.load %arg3[%c6, %c0_30] : memref<11x512xf32, #tpu.memory_space<vmem>>, vector<1x256xf32>
    %78 = arith.mulf %64, %76 : vector<1x256xf32>
    %79 = arith.subf %77, %78 : vector<1x256xf32>
    %80 = vector.broadcast %76 : vector<1x256xf32> to vector<2x256xf32>
    %81 = arith.mulf %60, %80 : vector<2x256xf32>
    %82 = vector.broadcast %79 : vector<1x256xf32> to vector<2x256xf32>
    %83 = arith.addf %81, %82 : vector<2x256xf32>
    %cst_31 = arith.constant 0.000000e+00 : f32
    %84 = vector.broadcast %cst_31 : f32 to vector<2x256xf32>
    %85 = arith.maximumf %83, %84 : vector<2x256xf32>
    %c0_i32_32 = arith.constant 0 : i32
    %86 = tpu.memref_slice %arg12[%c0_i32_32] : memref<2x!tpu.dma_semaphore, #tpu.memory_space<semaphore_mem>> -> memref<1x!tpu.dma_semaphore, #tpu.memory_space<semaphore_mem>>
    %87 = tpu.memref_squeeze %86 : memref<1x!tpu.dma_semaphore, #tpu.memory_space<semaphore_mem>> -> memref<!tpu.dma_semaphore, #tpu.memory_space<semaphore_mem>>
    tpu.wait_dma2 semaphore(%87 : memref<!tpu.dma_semaphore, #tpu.memory_space<semaphore_mem>>) src(%arg7 : memref<256x512xbf16, #tpu.memory_space<any>>) dst(%arg10 : memref<256x512xbf16, #tpu.memory_space<vmem>>)
    %88 = arith.truncf %85 : vector<2x256xf32> to vector<2x256xbf16>
    %c0_33 = arith.constant 0 : index
    %c0_34 = arith.constant 0 : index
    %89 = vector.load %arg10[%c0_33, %c0_34] : memref<256x512xbf16, #tpu.memory_space<vmem>>, vector<256x512xbf16>
    %cst_35 = arith.constant dense<0.000000e+00> : vector<2x512xf32>
    %90 = tpu.matmul %88, %89, %cst_35 {dimension_numbers = #tpu.dot_dimension_numbers<[1], [0], [0], [1], [0, 0, 1, 1], [], []>} : vector<2x256xbf16>, vector<256x512xbf16>, vector<2x512xf32> -> vector<2x512xf32>
    %c7 = arith.constant 7 : index
    %c0_36 = arith.constant 0 : index
    %91 = vector.load %arg3[%c7, %c0_36] : memref<11x512xf32, #tpu.memory_space<vmem>>, vector<1x512xf32>
    %92 = vector.broadcast %91 : vector<1x512xf32> to vector<2x512xf32>
    %93 = arith.addf %90, %92 : vector<2x512xf32>
    %cst_37 = arith.constant dense<0.000000e+00> : vector<512xf32>
    %94 = vector.multi_reduction <add>, %93, %cst_37 [0] : vector<2x512xf32> to vector<512xf32>
    %95 = vector.shape_cast %94 : vector<512xf32> to vector<1x512xf32>
    %c0_38 = arith.constant 0 : index
    %c0_39 = arith.constant 0 : index
    %96 = vector.load %arg5[%c0_38, %c0_39] : memref<512x8xf32, #tpu.memory_space<vmem>>, vector<512x8xf32>
    %cst_40 = arith.constant dense<0.000000e+00> : vector<1x8xf32>
    %97 = tpu.matmul %95, %96, %cst_40 {dimension_numbers = #tpu.dot_dimension_numbers<[1], [0], [0], [1], [0, 0, 1, 1], [], []>} : vector<1x512xf32>, vector<512x8xf32>, vector<1x8xf32> -> vector<1x8xf32>
    %98 = arith.mulf %93, %93 : vector<2x512xf32>
    %cst_41 = arith.constant dense<0.000000e+00> : vector<512xf32>
    %99 = vector.multi_reduction <add>, %98, %cst_41 [0] : vector<2x512xf32> to vector<512xf32>
    %100 = vector.shape_cast %99 : vector<512xf32> to vector<1x512xf32>
    %c0_42 = arith.constant 0 : index
    %c0_43 = arith.constant 0 : index
    %101 = vector.load %arg5[%c0_42, %c0_43] : memref<512x8xf32, #tpu.memory_space<vmem>>, vector<512x8xf32>
    %cst_44 = arith.constant dense<0.000000e+00> : vector<1x8xf32>
    %102 = tpu.matmul %100, %101, %cst_44 {dimension_numbers = #tpu.dot_dimension_numbers<[1], [0], [0], [1], [0, 0, 1, 1], [], []>} : vector<1x512xf32>, vector<512x8xf32>, vector<1x8xf32> -> vector<1x8xf32>
    %103 = vector.broadcast %4 : f32 to vector<1x8xf32>
    %104 = arith.mulf %97, %103 : vector<1x8xf32>
    %105 = vector.broadcast %4 : f32 to vector<1x8xf32>
    %106 = arith.mulf %102, %105 : vector<1x8xf32>
    %107 = arith.mulf %104, %104 : vector<1x8xf32>
    %108 = arith.subf %106, %107 : vector<1x8xf32>
    %cst_45 = arith.constant 0.000000e+00 : f32
    %109 = vector.broadcast %cst_45 : f32 to vector<1x8xf32>
    %110 = arith.maximumf %108, %109 : vector<1x8xf32>
    %c9 = arith.constant 9 : index
    %c0_46 = arith.constant 0 : index
    %111 = vector.load %arg3[%c9, %c0_46] : memref<11x512xf32, #tpu.memory_space<vmem>>, vector<1x8xf32>
    %cst_47 = arith.constant 9.99999974E-6 : f32
    %112 = vector.broadcast %cst_47 : f32 to vector<1x8xf32>
    %113 = arith.addf %110, %112 : vector<1x8xf32>
    %114 = math.rsqrt %113 : vector<1x8xf32>
    %115 = arith.mulf %111, %114 : vector<1x8xf32>
    %c10 = arith.constant 10 : index
    %c0_48 = arith.constant 0 : index
    %116 = vector.load %arg3[%c10, %c0_48] : memref<11x512xf32, #tpu.memory_space<vmem>>, vector<1x8xf32>
    %117 = arith.mulf %104, %115 : vector<1x8xf32>
    %118 = arith.subf %116, %117 : vector<1x8xf32>
    %c0_49 = arith.constant 0 : index
    %c0_50 = arith.constant 0 : index
    %119 = vector.load %arg6[%c0_49, %c0_50] : memref<8x512xf32, #tpu.memory_space<vmem>>, vector<8x512xf32>
    %cst_51 = arith.constant dense<0.000000e+00> : vector<1x512xf32>
    %120 = tpu.matmul %115, %119, %cst_51 {dimension_numbers = #tpu.dot_dimension_numbers<[1], [0], [0], [1], [0, 0, 1, 1], [], []>} : vector<1x8xf32>, vector<8x512xf32>, vector<1x512xf32> -> vector<1x512xf32>
    %c0_52 = arith.constant 0 : index
    %c0_53 = arith.constant 0 : index
    %121 = vector.load %arg6[%c0_52, %c0_53] : memref<8x512xf32, #tpu.memory_space<vmem>>, vector<8x512xf32>
    %cst_54 = arith.constant dense<0.000000e+00> : vector<1x512xf32>
    %122 = tpu.matmul %118, %121, %cst_54 {dimension_numbers = #tpu.dot_dimension_numbers<[1], [0], [0], [1], [0, 0, 1, 1], [], []>} : vector<1x8xf32>, vector<8x512xf32>, vector<1x512xf32> -> vector<1x512xf32>
    %123 = vector.broadcast %120 : vector<1x512xf32> to vector<2x512xf32>
    %124 = arith.mulf %93, %123 : vector<2x512xf32>
    %125 = vector.broadcast %122 : vector<1x512xf32> to vector<2x512xf32>
    %126 = arith.addf %124, %125 : vector<2x512xf32>
    %cst_55 = arith.constant 0.000000e+00 : f32
    %127 = vector.broadcast %cst_55 : f32 to vector<2x512xf32>
    %128 = arith.maximumf %126, %127 : vector<2x512xf32>
    %c1_i32_56 = arith.constant 1 : i32
    %129 = tpu.memref_slice %arg12[%c1_i32_56] : memref<2x!tpu.dma_semaphore, #tpu.memory_space<semaphore_mem>> -> memref<1x!tpu.dma_semaphore, #tpu.memory_space<semaphore_mem>>
    %130 = tpu.memref_squeeze %129 : memref<1x!tpu.dma_semaphore, #tpu.memory_space<semaphore_mem>> -> memref<!tpu.dma_semaphore, #tpu.memory_space<semaphore_mem>>
    tpu.wait_dma2 semaphore(%130 : memref<!tpu.dma_semaphore, #tpu.memory_space<semaphore_mem>>) src(%arg8 : memref<512x256xbf16, #tpu.memory_space<any>>) dst(%arg11 : memref<512x256xbf16, #tpu.memory_space<vmem>>)
    %131 = arith.truncf %128 : vector<2x512xf32> to vector<2x512xbf16>
    %c0_57 = arith.constant 0 : index
    %c0_58 = arith.constant 0 : index
    %132 = vector.load %arg11[%c0_57, %c0_58] : memref<512x256xbf16, #tpu.memory_space<vmem>>, vector<512x256xbf16>
    %cst_59 = arith.constant dense<0.000000e+00> : vector<2x256xf32>
    %133 = tpu.matmul %131, %132, %cst_59 {dimension_numbers = #tpu.dot_dimension_numbers<[1], [0], [0], [1], [0, 0, 1, 1], [], []>} : vector<2x512xbf16>, vector<512x256xbf16>, vector<2x256xf32> -> vector<2x256xf32>
    %c8 = arith.constant 8 : index
    %c0_60 = arith.constant 0 : index
    %134 = vector.load %arg3[%c8, %c0_60] : memref<11x512xf32, #tpu.memory_space<vmem>>, vector<1x256xf32>
    %135 = vector.broadcast %134 : vector<1x256xf32> to vector<2x256xf32>
    %136 = arith.addf %133, %135 : vector<2x256xf32>
    %cst_61 = arith.constant dense<0.000000e+00> : vector<2xf32>
    %137 = vector.multi_reduction <add>, %136, %cst_61 [1] : vector<2x256xf32> to vector<2xf32>
    %138 = vector.shape_cast %137 : vector<2xf32> to vector<2x1xf32>
    %cst_62 = arith.constant dense<0.000000e+00> : vector<1xf32>
    %139 = vector.multi_reduction <add>, %138, %cst_62 [0] : vector<2x1xf32> to vector<1xf32>
    %140 = vector.shape_cast %139 : vector<1xf32> to vector<1x1xf32>
    %141 = vector.broadcast %5 : f32 to vector<1x1xf32>
    %142 = arith.mulf %140, %141 : vector<1x1xf32>
    %143 = arith.mulf %136, %136 : vector<2x256xf32>
    %cst_63 = arith.constant dense<0.000000e+00> : vector<2xf32>
    %144 = vector.multi_reduction <add>, %143, %cst_63 [1] : vector<2x256xf32> to vector<2xf32>
    %145 = vector.shape_cast %144 : vector<2xf32> to vector<2x1xf32>
    %cst_64 = arith.constant dense<0.000000e+00> : vector<1xf32>
    %146 = vector.multi_reduction <add>, %145, %cst_64 [0] : vector<2x1xf32> to vector<1xf32>
    %147 = vector.shape_cast %146 : vector<1xf32> to vector<1x1xf32>
    %148 = vector.broadcast %5 : f32 to vector<1x1xf32>
    %149 = arith.mulf %147, %148 : vector<1x1xf32>
    %150 = arith.mulf %142, %142 : vector<1x1xf32>
    %151 = arith.subf %149, %150 : vector<1x1xf32>
    %cst_65 = arith.constant 0.000000e+00 : f32
    %152 = vector.broadcast %cst_65 : f32 to vector<1x1xf32>
    %153 = arith.maximumf %151, %152 : vector<1x1xf32>
    %cst_66 = arith.constant 9.99999974E-6 : f32
    %154 = vector.broadcast %cst_66 : f32 to vector<1x1xf32>
    %155 = arith.addf %153, %154 : vector<1x1xf32>
    %156 = math.rsqrt %155 : vector<1x1xf32>
    %157 = vector.broadcast %6 : f32 to vector<1x1xf32>
    %158 = arith.mulf %157, %156 : vector<1x1xf32>
    %159 = arith.mulf %142, %158 : vector<1x1xf32>
    %160 = vector.broadcast %7 : f32 to vector<1x1xf32>
    %161 = arith.subf %160, %159 : vector<1x1xf32>
    %162 = vector.broadcast %158 : vector<1x1xf32> to vector<2x256xf32>
    %163 = arith.mulf %136, %162 : vector<2x256xf32>
    %164 = vector.broadcast %161 : vector<1x1xf32> to vector<2x256xf32>
    %165 = arith.addf %163, %164 : vector<2x256xf32>
    %cst_67 = arith.constant 0.000000e+00 : f32
    %166 = vector.broadcast %cst_67 : f32 to vector<2x256xf32>
    %167 = arith.maximumf %165, %166 : vector<2x256xf32>
    %c0_68 = arith.constant 0 : index
    %c0_69 = arith.constant 0 : index
    %168 = vector.load %arg9[%c0_68, %c0_69] : memref<2x256xf32, #tpu.memory_space<vmem>>, vector<2x256xf32>
    tpu.vector_store %arg9[%c0_68, %c0_69], %167 {strides = array<i32>} : memref<2x256xf32, #tpu.memory_space<vmem>>, vector<2x256xf32>,
    return
  }
}

</mosaic_0001>

<llo_original>
// kernel: tpu_custom_call.1
$region0: #{tpu_custom_call.1}
  #allocation0 [shape = 'u32[]', space=smem, size = 0x4, offset = 0x4, fixed_abs, tag = 'smem constant byte address 0x4 - core index']
  #allocation1 [shape = 'u32[144,128]{1,0:T(1,128)}', space=vmem, size = 0x12000, scoped, tag = 'internal scratch']
  #allocation2 [shape = 'bf16[256,512]{1,0:T(16,128)(2,1)}', space=vmem, size = 0x40000, scoped, tag = 'scratch operand']
  #allocation3 [shape = 'bf16[512,256]{1,0:T(16,128)(2,1)}', space=vmem, size = 0x40000, scoped, tag = 'scratch operand']
  #allocation4 [shape = 's32[2]{0}', space=sflag, size = 0x8, scoped, tag = 'scratch operand']
  #allocation13 [shape = 's32[]', space=sflag, size = 0x4, offset = 0, fixed_abs, tag = 'sflag constant byte address 0x0 - dummy sync flag']
  #allocation14 [shape = 's32[]', space=sflag, size = 0x4, offset = 0, fixed_abs, tag = 'sflag constant byte address 0x0 - dummy sync flag']
  %s0 = inlined_call_operand.vmem [shape: f32[4], index: 0, kind: input, shape index: {}]
  %s1 = inlined_call_operand.vmem [shape: f32[2,16], index: 1, kind: input, shape index: {}]
  %s2 = inlined_call_operand.vmem [shape: bf16[16,128], index: 2, kind: input, shape index: {}]
  %s3 = inlined_call_operand.hbm [shape: f32[11,512], index: 3, kind: input, shape index: {}]
  %s4 = inlined_call_operand.hbm [shape: bf16[128,256], index: 4, kind: input, shape index: {}]
  %s5 = inlined_call_operand.vmem [shape: f32[512,8], index: 5, kind: input, shape index: {}]
  %s6 = inlined_call_operand.vmem [shape: f32[8,512], index: 6, kind: input, shape index: {}]
  %s7 = inlined_call_operand.vmem [shape: bf16[256,512], index: 7, kind: input, shape index: {}]
  %s8 = inlined_call_operand.hbm [shape: bf16[512,256], index: 8, kind: input, shape index: {}]
  %s9 = inlined_call_operand.hbm [shape: f32[2,256], index: 9, kind: output, shape index: {}]
  %s10 = sld [smem:[#allocation0]]
  $region87: #{tpu_custom_call.1} parent=0
    _
  %s12 = ssub.s32 1, %s10
  %s13 = scalar_select 0, %s12, %s10
  $region1: #{tpu_custom_call.1} parent=0
    #allocation5 [shape = 'u8[512]{0}', space=smem, size = 0x200, scoped, tag = 'input window, operand 0, single buffered']
    #allocation6 [shape = 's32[1]{0}', space=sflag, size = 0x4, scoped, tag = 'scoped memory for tpu_custom_call.1']
    #allocation7 [shape = 's32[1]{0}', space=sflag, size = 0x4, scoped, tag = 'scoped memory for tpu_custom_call.1']
    #allocation8 [shape = 's32[1]{0}', space=sflag, size = 0x4, scoped, tag = 'scoped memory for tpu_custom_call.1']
    #allocation9 [shape = 'u8[32768]{0}', space=vmem, size = 0x8000, scoped, tag = 'input window, operand 3, single buffered']
    #allocation10 [shape = 'u8[65536]{0}', space=vmem, size = 0x10000, scoped, tag = 'input window, operand 4, single buffered']
    #allocation11 [shape = 's32[1]{0}', space=sflag, size = 0x4, scoped, tag = 'scoped memory for tpu_custom_call.1']
    #allocation12 [shape = 'u8[2048]{0}', space=vmem, size = 0x800, scoped, tag = 'output window, operand 0, single buffered']
    #allocation15 [shape = 'u32[9]{0}', space=smem, size = 0x24, scoped, tag = 'DMA stride descriptor']
    %14 = vsyncpa [#allocation8], 0
    %15 = vsyncpa [#allocation6], 0
    %16 = vsyncpa [#allocation11], 0
    %17 = vsyncpa [#allocation7], 0
    // Predicated region
    $region2: #{tpu_custom_call.1} parent=1 // pred_check
      _
    $region3: #{tpu_custom_call.1} parent=1 // pred_check_branch
      %19 = sbr.rel (0) target = $region5
    $region4: #{tpu_custom_call.1} parent=1 // pred_region
      %s21 = ssub.s32 16, 16
      %22 = vsyncadd [#allocation8], %s21
      %s24 = sshll.u32 %s0, 4
      %s25 = int_to_ptr.vmem [resolvable:$true] %s24
      %27 = dma.vmem_to_smem %s25, 16, [#allocation5], [#allocation8]
    $region5: #{tpu_custom_call.1} parent=1 // pred_fallthru
      _
    // Predicated region
    $region6: #{tpu_custom_call.1} parent=1 // pred_check
      _
    $region7: #{tpu_custom_call.1} parent=1 // pred_check_branch
      %29 = sbr.rel (0) target = $region9
    $region8: #{tpu_custom_call.1} parent=1 // pred_region
      _
    $region9: #{tpu_custom_call.1} parent=1 // pred_fallthru
      _
    // Predicated region
    $region10: #{tpu_custom_call.1} parent=1 // pred_check
      _
    $region11: #{tpu_custom_call.1} parent=1 // pred_check_branch
      %31 = sbr.rel (0) target = $region13
    $region12: #{tpu_custom_call.1} parent=1 // pred_region
      _
    $region13: #{tpu_custom_call.1} parent=1 // pred_fallthru
      _
    // Predicated region
    $region14: #{tpu_custom_call.1} parent=1 // pred_check
      _
    $region15: #{tpu_custom_call.1} parent=1 // pred_check_branch
      %33 = sbr.rel (0) target = $region17
    $region16: #{tpu_custom_call.1} parent=1 // pred_region
      %s35 = ssub.s32 1024, 1024
      %36 = vsyncadd [#allocation6], %s35
      %s37 = sshll.u32 [#allocation9], 4
      %s38 = int_to_ptr.vmem [resolvable:$true] %s37
      %43 = dma.hbm_to_vmem [thread:$0]  %s3, 1024, %s38, [#allocation6], 512, 512, 32
    $region17: #{tpu_custom_call.1} parent=1 // pred_fallthru
      _
    // Predicated region
    $region18: #{tpu_custom_call.1} parent=1 // pred_check
      _
    $region19: #{tpu_custom_call.1} parent=1 // pred_check_branch
      %45 = sbr.rel (0) target = $region21
    $region20: #{tpu_custom_call.1} parent=1 // pred_region
      %s47 = ssub.s32 2048, 2048
      %48 = vsyncadd [#allocation11], %s47
      %s49 = sshll.u32 [#allocation10], 4
      %s50 = int_to_ptr.vmem [resolvable:$true] %s49
      %55 = dma.hbm_to_vmem [thread:$0]  %s4, 2048, %s50, [#allocation11], 128, 128, 8
    $region21: #{tpu_custom_call.1} parent=1 // pred_fallthru
      _
    // Predicated region
    $region22: #{tpu_custom_call.1} parent=1 // pred_check
      _
    $region23: #{tpu_custom_call.1} parent=1 // pred_check_branch
      %57 = sbr.rel (0) target = $region25
    $region24: #{tpu_custom_call.1} parent=1 // pred_region
      _
    $region25: #{tpu_custom_call.1} parent=1 // pred_fallthru
      _
    // Predicated region
    $region26: #{tpu_custom_call.1} parent=1 // pred_check
      _
    $region27: #{tpu_custom_call.1} parent=1 // pred_check_branch
      %59 = sbr.rel (0) target = $region29
    $region28: #{tpu_custom_call.1} parent=1 // pred_region
      _
    $region29: #{tpu_custom_call.1} parent=1 // pred_fallthru
      _
    // Predicated region
    $region30: #{tpu_custom_call.1} parent=1 // pred_check
      _
    $region31: #{tpu_custom_call.1} parent=1 // pred_check_branch
      %61 = sbr.rel (0) target = $region33
    $region32: #{tpu_custom_call.1} parent=1 // pred_region
      %62 = dma.done [#allocation8], 16
    $region33: #{tpu_custom_call.1} parent=1 // pred_fallthru
      _
    // Predicated region
    $region34: #{tpu_custom_call.1} parent=1 // pred_check
      _
    $region35: #{tpu_custom_call.1} parent=1 // pred_check_branch
      %64 = sbr.rel (0) target = $region37
    $region36: #{tpu_custom_call.1} parent=1 // pred_region
      %65 = dma.done [#allocation6], 1024
    $region37: #{tpu_custom_call.1} parent=1 // pred_fallthru
      _
    // Predicated region
    $region38: #{tpu_custom_call.1} parent=1 // pred_check
      _
    $region39: #{tpu_custom_call.1} parent=1 // pred_check_branch
      %67 = sbr.rel (0) target = $region41
    $region40: #{tpu_custom_call.1} parent=1 // pred_region
      %68 = dma.done [#allocation11], 2048
    $region41: #{tpu_custom_call.1} parent=1 // pred_fallthru
      _
    %69 = sfence
    %p72 = scmp.lt.u32.totalorder 4, 8
    %p73 = pneg %p72
    // Predicated region
    $region42: #{tpu_custom_call.1} parent=1 // pred_check
      _
    $region43: #{tpu_custom_call.1} parent=1 // pred_check_branch
      %75 = sbr.rel (%p72) target = $region45
    $region44: #{tpu_custom_call.1} parent=1 // pred_region
      %s344 = sand.u32 4, 7
      %p345 = scmp.eq.s32.totalorder %s344, 0
      %p346 = pneg %p345
      // Predicated region
      $region57: #{tpu_custom_call.1} parent=44 // pred_check
        _
      $region58: #{tpu_custom_call.1} parent=44 // pred_check_branch
        %348 = sbr.rel (%p345) target = $region60
      $region59: #{tpu_custom_call.1} parent=44 // pred_region
        %s349 = sand.u32 4, 7
        %s350 = ssub.s32 4, %s349
        %s351 = scalar_lea.vmem %s7, %s350
        %s352 = ssub.s32 4, %s349
        %s353 = scalar_lea.vmem [#allocation2], %s352
        loop: start=0, step=1, limit=1
        $region61: #{tpu_custom_call.1} parent=59 // loop_pre_header
          _
        $region62: #{tpu_custom_call.1} parent=59 // loop_header
          %s355 = sphi 0, %s359
          %p356 = scmp.ge.s32.totalorder %s355, 1
          %s360 = sphi %s7, %s7
          %s361 = sphi [#allocation2], [#allocation2]
        $region63: #{tpu_custom_call.1} parent=59 // loop_header_branch
          %358 = sbr.rel (%p356) target = $region67
        $region64: #{tpu_custom_call.1} parent=59 // loop_body
          _
        $region65: #{tpu_custom_call.1} parent=59 // loop_footer
          %s359 = sadd.s32 1, %s355
        $region66: #{tpu_custom_call.1} parent=59 // loop_footer_branch
          %354 = sbr.rel target = $region62
        $region67: #{tpu_custom_call.1} parent=59 // loop_exit
          _
        %s362 = sshllo.u32 0, %s349
        loop: start=0, step=1, limit=1
        $region68: #{tpu_custom_call.1} parent=59 // loop_pre_header
          _
        $region69: #{tpu_custom_call.1} parent=59 // loop_header
          %s364 = sphi 0, %s368
          %p365 = scmp.ge.s32.totalorder %s364, 1
          %s369 = sphi %s351, %s351
          %s370 = sphi %s353, %s353
        $region70: #{tpu_custom_call.1} parent=59 // loop_header_branch
          %367 = sbr.rel (%p365) target = $region74
        $region71: #{tpu_custom_call.1} parent=59 // loop_body
          %v371 = vld [vmem:[%s369] sm:%s362]
          %372 = vst [vmem:[%s370] sm:%s362] %v371
          %v373 = vld [vmem:[%s369 + $0x10] sm:%s362]
          %374 = vst [vmem:[%s370 + $0x4] sm:%s362] %v373
          %v375 = vld [vmem:[%s369 + $0x4] sm:%s362]
          %376 = vst [vmem:[%s370 + $0x8] sm:%s362] %v375
          %v377 = vld [vmem:[%s369 + $0x14] sm:%s362]
          %378 = vst [vmem:[%s370 + $0xc] sm:%s362] %v377
          %v379 = vld [vmem:[%s369 + $0x8] sm:%s362]
          %380 = vst [vmem:[%s370 + $0x10] sm:%s362] %v379
          %v381 = vld [vmem:[%s369 + $0x18] sm:%s362]
          %382 = vst [vmem:[%s370 + $0x14] sm:%s362] %v381
          %v383 = vld [vmem:[%s369 + $0xc] sm:%s362]
          %384 = vst [vmem:[%s370 + $0x18] sm:%s362] %v383
          %v385 = vld [vmem:[%s369 + $0x1c] sm:%s362]
          %386 = vst [vmem:[%s370 + $0x1c] sm:%s362] %v385
          %v387 = vld [vmem:[%s369 + $0x20] sm:%s362]
          %388 = vst [vmem:[%s370 + $0x20] sm:%s362] %v387
          %v389 = vld [vmem:[%s369 + $0x30] sm:%s362]
          %390 = vst [vmem:[%s370 + $0x24] sm:%s362] %v389
          %v391 = vld [vmem:[%s369 + $0x24] sm:%s362]
          %392 = vst [vmem:[%s370 + $0x28] sm:%s362] %v391
          %v393 = vld [vmem:[%s369 + $0x34] sm:%s362]
          %394 = vst [vmem:[%s370 + $0x2c] sm:%s362] %v393
          %v395 = vld [vmem:[%s369 + $0x28] sm:%s362]
          %396 = vst [vmem:[%s370 + $0x30] sm:%s362] %v395
          %v397 = vld [vmem:[%s369 + $0x38] sm:%s362]
          %398 = vst [vmem:[%s370 + $0x34] sm:%s362] %v397
          %v399 = vld [vmem:[%s369 + $0x2c] sm:%s362]
          %400 = vst [vmem:[%s370 + $0x38] sm:%s362] %v399
          %v401 = vld [vmem:[%s369 + $0x3c] sm:%s362]
          %402 = vst [vmem:[%s370 + $0x3c] sm:%s362] %v401
          %v403 = vld [vmem:[%s369 + $0x40] sm:%s362]
          %404 = vst [vmem:[%s370 + $0x40] sm:%s362] %v403
          %v405 = vld [vmem:[%s369 + $0x50] sm:%s362]
          %406 = vst [vmem:[%s370 + $0x44] sm:%s362] %v405
          %v407 = vld [vmem:[%s369 + $0x44] sm:%s362]
          %408 = vst [vmem:[%s370 + $0x48] sm:%s362] %v407
          %v409 = vld [vmem:[%s369 + $0x54] sm:%s362]
          %410 = vst [vmem:[%s370 + $0x4c] sm:%s362] %v409
          %v411 = vld [vmem:[%s369 + $0x48] sm:%s362]
          %412 = vst [vmem:[%s370 + $0x50] sm:%s362] %v411
          %v413 = vld [vmem:[%s369 + $0x58] sm:%s362]
          %414 = vst [vmem:[%s370 + $0x54] sm:%s362] %v413
          %v415 = vld [vmem:[%s369 + $0x4c] sm:%s362]
          %416 = vst [vmem:[%s370 + $0x58] sm:%s362] %v415
          %v417 = vld [vmem:[%s369 + $0x5c] sm:%s362]
          %418 = vst [vmem:[%s370 + $0x5c] sm:%s362] %v417
          %v419 = vld [vmem:[%s369 + $0x60] sm:%s362]
          %420 = vst [vmem:[%s370 + $0x60] sm:%s362] %v419
          %v421 = vld [vmem:[%s369 + $0x70] sm:%s362]
          %422 = vst [vmem:[%s370 + $0x64] sm:%s362] %v421
          %v423 = vld [vmem:[%s369 + $0x64] sm:%s362]
          %424 = vst [vmem:[%s370 + $0x68] sm:%s362] %v423
          %v425 = vld [vmem:[%s369 + $0x74] sm:%s362]
          %426 = vst [vmem:[%s370 + $0x6c] sm:%s362] %v425
          %v427 = vld [vmem:[%s369 + $0x68] sm:%s362]
          %428 = vst [vmem:[%s370 + $0x70] sm:%s362] %v427
          %v429 = vld [vmem:[%s369 + $0x78] sm:%s362]
          %430 = vst [vmem:[%s370 + $0x74] sm:%s362] %v429
          %v431 = vld [vmem:[%s369 + $0x6c] sm:%s362]
          %432 = vst [vmem:[%s370 + $0x78] sm:%s362] %v431
          %v433 = vld [vmem:[%s369 + $0x7c] sm:%s362]
          %434 = vst [vmem:[%s370 + $0x7c] sm:%s362] %v433
          %v435 = vld [vmem:[%s369 + $0x80] sm:%s362]
          %436 = vst [vmem:[%s370 + $0x80] sm:%s362] %v435
          %v437 = vld [vmem:[%s369 + $0x90] sm:%s362]
          %438 = vst [vmem:[%s370 + $0x84] sm:%s362] %v437
          %v439 = vld [vmem:[%s369 + $0x84] sm:%s362]
          %440 = vst [vmem:[%s370 + $0x88] sm:%s362] %v439
          %v441 = vld [vmem:[%s369 + $0x94] sm:%s362]
          %442 = vst [vmem:[%s370 + $0x8c] sm:%s362] %v441
          %v443 = vld [vmem:[%s369 + $0x88] sm:%s362]
          %444 = vst [vmem:[%s370 + $0x90] sm:%s362] %v443
          %v445 = vld [vmem:[%s369 + $0x98] sm:%s362]
          %446 = vst [vmem:[%s370 + $0x94] sm:%s362] %v445
          %v447 = vld [vmem:[%s369 + $0x8c] sm:%s362]
          %448 = vst [vmem:[%s370 + $0x98] sm:%s362] %v447
          %v449 = vld [vmem:[%s369 + $0x9c] sm:%s362]
          %450 = vst [vmem:[%s370 + $0x9c] sm:%s362] %v449
          %v451 = vld [vmem:[%s369 + $0xa0] sm:%s362]
          %452 = vst [vmem:[%s370 + $0xa0] sm:%s362] %v451
          %v453 = vld [vmem:[%s369 + $0xb0] sm:%s362]
          %454 = vst [vmem:[%s370 + $0xa4] sm:%s362] %v453
          %v455 = vld [vmem:[%s369 + $0xa4] sm:%s362]
          %456 = vst [vmem:[%s370 + $0xa8] sm:%s362] %v455
          %v457 = vld [vmem:[%s369 + $0xb4] sm:%s362]
          %458 = vst [vmem:[%s370 + $0xac] sm:%s362] %v457
          %v459 = vld [vmem:[%s369 + $0xa8] sm:%s362]
          %460 = vst [vmem:[%s370 + $0xb0] sm:%s362] %v459
          %v461 = vld [vmem:[%s369 + $0xb8] sm:%s362]
          %462 = vst [vmem:[%s370 + $0xb4] sm:%s362] %v461
          %v463 = vld [vmem:[%s369 + $0xac] sm:%s362]
          %464 = vst [vmem:[%s370 + $0xb8] sm:%s362] %v463
          %v465 = vld [vmem:[%s369 + $0xbc] sm:%s362]
          %466 = vst [vmem:[%s370 + $0xbc] sm:%s362] %v465
          %v467 = vld [vmem:[%s369 + $0xc0] sm:%s362]
          %468 = vst [vmem:[%s370 + $0xc0] sm:%s362] %v467
          %v469 = vld [vmem:[%s369 + $0xd0] sm:%s362]
          %470 = vst [vmem:[%s370 + $0xc4] sm:%s362] %v469
          %v471 = vld [vmem:[%s369 + $0xc4] sm:%s362]
          %472 = vst [vmem:[%s370 + $0xc8] sm:%s362] %v471
          %v473 = vld [vmem:[%s369 + $0xd4] sm:%s362]
          %474 = vst [vmem:[%s370 + $0xcc] sm:%s362] %v473
          %v475 = vld [vmem:[%s369 + $0xc8] sm:%s362]
          %476 = vst [vmem:[%s370 + $0xd0] sm:%s362] %v475
          %v477 = vld [vmem:[%s369 + $0xd8] sm:%s362]
          %478 = vst [vmem:[%s370 + $0xd4] sm:%s362] %v477
          %v479 = vld [vmem:[%s369 + $0xcc] sm:%s362]
          %480 = vst [vmem:[%s370 + $0xd8] sm:%s362] %v479
          %v481 = vld [vmem:[%s369 + $0xdc] sm:%s362]
          %482 = vst [vmem:[%s370 + $0xdc] sm:%s362] %v481
          %v483 = vld [vmem:[%s369 + $0xe0] sm:%s362]
          %484 = vst [vmem:[%s370 + $0xe0] sm:%s362] %v483
          %v485 = vld [vmem:[%s369 + $0xf0] sm:%s362]
          %486 = vst [vmem:[%s370 + $0xe4] sm:%s362] %v485
          %v487 = vld [vmem:[%s369 + $0xe4] sm:%s362]
          %488 = vst [vmem:[%s370 + $0xe8] sm:%s362] %v487
          %v489 = vld [vmem:[%s369 + $0xf4] sm:%s362]
          %490 = vst [vmem:[%s370 + $0xec] sm:%s362] %v489
          %v491 = vld [vmem:[%s369 + $0xe8] sm:%s362]
          %492 = vst [vmem:[%s370 + $0xf0] sm:%s362] %v491
          %v493 = vld [vmem:[%s369 + $0xf8] sm:%s362]
          %494 = vst [vmem:[%s370 + $0xf4] sm:%s362] %v493
          %v495 = vld [vmem:[%s369 + $0xec] sm:%s362]
          %496 = vst [vmem:[%s370 + $0xf8] sm:%s362] %v495
          %v497 = vld [vmem:[%s369 + $0xfc] sm:%s362]
          %498 = vst [vmem:[%s370 + $0xfc] sm:%s362] %v497
          %v499 = vld [vmem:[%s369 + $0x100] sm:%s362]
          %500 = vst [vmem:[%s370 + $0x100] sm:%s362] %v499
          %v501 = vld [vmem:[%s369 + $0x110] sm:%s362]
          %502 = vst [vmem:[%s370 + $0x104] sm:%s362] %v501
          %v503 = vld [vmem:[%s369 + $0x104] sm:%s362]
          %504 = vst [vmem:[%s370 + $0x108] sm:%s362] %v503
          %v505 = vld [vmem:[%s369 + $0x114] sm:%s362]
          %506 = vst [vmem:[%s370 + $0x10c] sm:%s362] %v505
          %v507 = vld [vmem:[%s369 + $0x108] sm:%s362]
          %508 = vst [vmem:[%s370 + $0x110] sm:%s362] %v507
          %v509 = vld [vmem:[%s369 + $0x118] sm:%s362]
          %510 = vst [vmem:[%s370 + $0x114] sm:%s362] %v509
          %v511 = vld [vmem:[%s369 + $0x10c] sm:%s362]
          %512 = vst [vmem:[%s370 + $0x118] sm:%s362] %v511
          %v513 = vld [vmem:[%s369 + $0x11c] sm:%s362]
          %514 = vst [vmem:[%s370 + $0x11c] sm:%s362] %v513
          %v515 = vld [vmem:[%s369 + $0x120] sm:%s362]
          %516 = vst [vmem:[%s370 + $0x120] sm:%s362] %v515
          %v517 = vld [vmem:[%s369 + $0x130] sm:%s362]
          %518 = vst [vmem:[%s370 + $0x124] sm:%s362] %v517
          %v519 = vld [vmem:[%s369 + $0x124] sm:%s362]
          %520 = vst [vmem:[%s370 + $0x128] sm:%s362] %v519
          %v521 = vld [vmem:[%s369 + $0x134] sm:%s362]
          %522 = vst [vmem:[%s370 + $0x12c] sm:%s362] %v521
          %v523 = vld [vmem:[%s369 + $0x128] sm:%s362]
          %524 = vst [vmem:[%s370 + $0x130] sm:%s362] %v523
          %v525 = vld [vmem:[%s369 + $0x138] sm:%s362]
          %526 = vst [vmem:[%s370 + $0x134] sm:%s362] %v525
          %v527 = vld [vmem:[%s369 + $0x12c] sm:%s362]
          %528 = vst [vmem:[%s370 + $0x138] sm:%s362] %v527
          %v529 = vld [vmem:[%s369 + $0x13c] sm:%s362]
          %530 = vst [vmem:[%s370 + $0x13c] sm:%s362] %v529
          %v531 = vld [vmem:[%s369 + $0x140] sm:%s362]
          %532 = vst [vmem:[%s370 + $0x140] sm:%s362] %v531
          %v533 = vld [vmem:[%s369 + $0x150] sm:%s362]
          %534 = vst [vmem:[%s370 + $0x144] sm:%s362] %v533
          %v535 = vld [vmem:[%s369 + $0x144] sm:%s362]
          %536 = vst [vmem:[%s370 + $0x148] sm:%s362] %v535
          %v537 = vld [vmem:[%s369 + $0x154] sm:%s362]
          %538 = vst [vmem:[%s370 + $0x14c] sm:%s362] %v537
          %v539 = vld [vmem:[%s369 + $0x148] sm:%s362]
          %540 = vst [vmem:[%s370 + $0x150] sm:%s362] %v539
          %v541 = vld [vmem:[%s369 + $0x158] sm:%s362]
          %542 = vst [vmem:[%s370 + $0x154] sm:%s362] %v541
          %v543 = vld [vmem:[%s369 + $0x14c] sm:%s362]
          %544 = vst [vmem:[%s370 + $0x158] sm:%s362] %v543
          %v545 = vld [vmem:[%s369 + $0x15c] sm:%s362]
          %546 = vst [vmem:[%s370 + $0x15c] sm:%s362] %v545
          %v547 = vld [vmem:[%s369 + $0x160] sm:%s362]
          %548 = vst [vmem:[%s370 + $0x160] sm:%s362] %v547
          %v549 = vld [vmem:[%s369 + $0x170] sm:%s362]
          %550 = vst [vmem:[%s370 + $0x164] sm:%s362] %v549
          %v551 = vld [vmem:[%s369 + $0x164] sm:%s362]
          %552 = vst [vmem:[%s370 + $0x168] sm:%s362] %v551
          %v553 = vld [vmem:[%s369 + $0x174] sm:%s362]
          %554 = vst [vmem:[%s370 + $0x16c] sm:%s362] %v553
          %v555 = vld [vmem:[%s369 + $0x168] sm:%s362]
          %556 = vst [vmem:[%s370 + $0x170] sm:%s362] %v555
          %v557 = vld [vmem:[%s369 + $0x178] sm:%s362]
          %558 = vst [vmem:[%s370 + $0x174] sm:%s362] %v557
          %v559 = vld [vmem:[%s369 + $0x16c] sm:%s362]
          %560 = vst [vmem:[%s370 + $0x178] sm:%s362] %v559
          %v561 = vld [vmem:[%s369 + $0x17c] sm:%s362]
          %562 = vst [vmem:[%s370 + $0x17c] sm:%s362] %v561
          %v563 = vld [vmem:[%s369 + $0x180] sm:%s362]
          %564 = vst [vmem:[%s370 + $0x180] sm:%s362] %v563
          %v565 = vld [vmem:[%s369 + $0x190] sm:%s362]
          %566 = vst [vmem:[%s370 + $0x184] sm:%s362] %v565
          %v567 = vld [vmem:[%s369 + $0x184] sm:%s362]
          %568 = vst [vmem:[%s370 + $0x188] sm:%s362] %v567
          %v569 = vld [vmem:[%s369 + $0x194] sm:%s362]
          %570 = vst [vmem:[%s370 + $0x18c] sm:%s362] %v569
          %v571 = vld [vmem:[%s369 + $0x188] sm:%s362]
          %572 = vst [vmem:[%s370 + $0x190] sm:%s362] %v571
          %v573 = vld [vmem:[%s369 + $0x198] sm:%s362]
          %574 = vst [vmem:[%s370 + $0x194] sm:%s362] %v573
          %v575 = vld [vmem:[%s369 + $0x18c] sm:%s362]
          %576 = vst [vmem:[%s370 + $0x198] sm:%s362] %v575
          %v577 = vld [vmem:[%s369 + $0x19c] sm:%s362]
          %578 = vst [vmem:[%s370 + $0x19c] sm:%s362] %v577
          %v579 = vld [vmem:[%s369 + $0x1a0] sm:%s362]
          %580 = vst [vmem:[%s370 + $0x1a0] sm:%s362] %v579
          %v581 = vld [vmem:[%s369 + $0x1b0] sm:%s362]
          %582 = vst [vmem:[%s370 + $0x1a4] sm:%s362] %v581
          %v583 = vld [vmem:[%s369 + $0x1a4] sm:%s362]
          %584 = vst [vmem:[%s370 + $0x1a8] sm:%s362] %v583
          %v585 = vld [vmem:[%s369 + $0x1b4] sm:%s362]
          %586 = vst [vmem:[%s370 + $0x1ac] sm:%s362] %v585
          %v587 = vld [vmem:[%s369 + $0x1a8] sm:%s362]
          %588 = vst [vmem:[%s370 + $0x1b0] sm:%s362] %v587
          %v589 = vld [vmem:[%s369 + $0x1b8] sm:%s362]
          %590 = vst [vmem:[%s370 + $0x1b4] sm:%s362] %v589
          %v591 = vld [vmem:[%s369 + $0x1ac] sm:%s362]
          %592 = vst [vmem:[%s370 + $0x1b8] sm:%s362] %v591
          %v593 = vld [vmem:[%s369 + $0x1bc] sm:%s362]
          %594 = vst [vmem:[%s370 + $0x1bc] sm:%s362] %v593
          %v595 = vld [vmem:[%s369 + $0x1c0] sm:%s362]
          %596 = vst [vmem:[%s370 + $0x1c0] sm:%s362] %v595
          %v597 = vld [vmem:[%s369 + $0x1d0] sm:%s362]
          %598 = vst [vmem:[%s370 + $0x1c4] sm:%s362] %v597
          %v599 = vld [vmem:[%s369 + $0x1c4] sm:%s362]
          %600 = vst [vmem:[%s370 + $0x1c8] sm:%s362] %v599
          %v601 = vld [vmem:[%s369 + $0x1d4] sm:%s362]
          %602 = vst [vmem:[%s370 + $0x1cc] sm:%s362] %v601
          %v603 = vld [vmem:[%s369 + $0x1c8] sm:%s362]
          %604 = vst [vmem:[%s370 + $0x1d0] sm:%s362] %v603
          %v605 = vld [vmem:[%s369 + $0x1d8] sm:%s362]
          %606 = vst [vmem:[%s370 + $0x1d4] sm:%s362] %v605
          %v607 = vld [vmem:[%s369 + $0x1cc] sm:%s362]
          %608 = vst [vmem:[%s370 + $0x1d8] sm:%s362] %v607
          %v609 = vld [vmem:[%s369 + $0x1dc] sm:%s362]
          %610 = vst [vmem:[%s370 + $0x1dc] sm:%s362] %v609
          %v611 = vld [vmem:[%s369 + $0x1e0] sm:%s362]
          %612 = vst [vmem:[%s370 + $0x1e0] sm:%s362] %v611
          %v613 = vld [vmem:[%s369 + $0x1f0] sm:%s362]
          %614 = vst [vmem:[%s370 + $0x1e4] sm:%s362] %v613
          %v615 = vld [vmem:[%s369 + $0x1e4] sm:%s362]
          %616 = vst [vmem:[%s370 + $0x1e8] sm:%s362] %v615
          %v617 = vld [vmem:[%s369 + $0x1f4] sm:%s362]
          %618 = vst [vmem:[%s370 + $0x1ec] sm:%s362] %v617
          %v619 = vld [vmem:[%s369 + $0x1e8] sm:%s362]
          %620 = vst [vmem:[%s370 + $0x1f0] sm:%s362] %v619
          %v621 = vld [vmem:[%s369 + $0x1f8] sm:%s362]
          %622 = vst [vmem:[%s370 + $0x1f4] sm:%s362] %v621
          %v623 = vld [vmem:[%s369 + $0x1ec] sm:%s362]
          %624 = vst [vmem:[%s370 + $0x1f8] sm:%s362] %v623
          %v625 = vld [vmem:[%s369 + $0x1fc] sm:%s362]
          %626 = vst [vmem:[%s370 + $0x1fc] sm:%s362] %v625
        $region72: #{tpu_custom_call.1} parent=59 // loop_footer
          %s368 = sadd.s32 1, %s364
        $region73: #{tpu_custom_call.1} parent=59 // loop_footer_branch
          %363 = sbr.rel target = $region69
        $region74: #{tpu_custom_call.1} parent=59 // loop_exit
          _
      $region60: #{tpu_custom_call.1} parent=44 // pred_fallthru
        _
    $region45: #{tpu_custom_call.1} parent=1 // pred_fallthru
      _
    // Predicated region
    $region46: #{tpu_custom_call.1} parent=1 // pred_check
      %p76 = pneg %p72
    $region47: #{tpu_custom_call.1} parent=1 // pred_check_branch
      %78 = sbr.rel (%p76) target = $region49
    $region48: #{tpu_custom_call.1} parent=1 // pred_region
      %s79 = sshllo.u32 0, 4
      loop: start=0, step=1, limit=1
      $region50: #{tpu_custom_call.1} parent=48 // loop_pre_header
        _
      $region51: #{tpu_custom_call.1} parent=48 // loop_header
        %s81 = sphi 0, %s85
        %p82 = scmp.ge.s32.totalorder %s81, 1
        %s86 = sphi %s7, %s7
        %s87 = sphi [#allocation2], [#allocation2]
      $region52: #{tpu_custom_call.1} parent=48 // loop_header_branch
        %84 = sbr.rel (%p82) target = $region56
      $region53: #{tpu_custom_call.1} parent=48 // loop_body
        %v88 = vld [vmem:[%s86] sm:%s79]
        %89 = vst [vmem:[%s87] sm:%s79] %v88
        %v90 = vld [vmem:[%s86 + $0x10] sm:%s79]
        %91 = vst [vmem:[%s87 + $0x4] sm:%s79] %v90
        %v92 = vld [vmem:[%s86 + $0x4] sm:%s79]
        %93 = vst [vmem:[%s87 + $0x8] sm:%s79] %v92
        %v94 = vld [vmem:[%s86 + $0x14] sm:%s79]
        %95 = vst [vmem:[%s87 + $0xc] sm:%s79] %v94
        %v96 = vld [vmem:[%s86 + $0x8] sm:%s79]
        %97 = vst [vmem:[%s87 + $0x10] sm:%s79] %v96
        %v98 = vld [vmem:[%s86 + $0x18] sm:%s79]
        %99 = vst [vmem:[%s87 + $0x14] sm:%s79] %v98
        %v100 = vld [vmem:[%s86 + $0xc] sm:%s79]
        %101 = vst [vmem:[%s87 + $0x18] sm:%s79] %v100
        %v102 = vld [vmem:[%s86 + $0x1c] sm:%s79]
        %103 = vst [vmem:[%s87 + $0x1c] sm:%s79] %v102
        %v104 = vld [vmem:[%s86 + $0x20] sm:%s79]
        %105 = vst [vmem:[%s87 + $0x20] sm:%s79] %v104
        %v106 = vld [vmem:[%s86 + $0x30] sm:%s79]
        %107 = vst [vmem:[%s87 + $0x24] sm:%s79] %v106
        %v108 = vld [vmem:[%s86 + $0x24] sm:%s79]
        %109 = vst [vmem:[%s87 + $0x28] sm:%s79] %v108
        %v110 = vld [vmem:[%s86 + $0x34] sm:%s79]
        %111 = vst [vmem:[%s87 + $0x2c] sm:%s79] %v110
        %v112 = vld [vmem:[%s86 + $0x28] sm:%s79]
        %113 = vst [vmem:[%s87 + $0x30] sm:%s79] %v112
        %v114 = vld [vmem:[%s86 + $0x38] sm:%s79]
        %115 = vst [vmem:[%s87 + $0x34] sm:%s79] %v114
        %v116 = vld [vmem:[%s86 + $0x2c] sm:%s79]
        %117 = vst [vmem:[%s87 + $0x38] sm:%s79] %v116
        %v118 = vld [vmem:[%s86 + $0x3c] sm:%s79]
        %119 = vst [vmem:[%s87 + $0x3c] sm:%s79] %v118
        %v120 = vld [vmem:[%s86 + $0x40] sm:%s79]
        %121 = vst [vmem:[%s87 + $0x40] sm:%s79] %v120
        %v122 = vld [vmem:[%s86 + $0x50] sm:%s79]
        %123 = vst [vmem:[%s87 + $0x44] sm:%s79] %v122
        %v124 = vld [vmem:[%s86 + $0x44] sm:%s79]
        %125 = vst [vmem:[%s87 + $0x48] sm:%s79] %v124
        %v126 = vld [vmem:[%s86 + $0x54] sm:%s79]
        %127 = vst [vmem:[%s87 + $0x4c] sm:%s79] %v126
        %v128 = vld [vmem:[%s86 + $0x48] sm:%s79]
        %129 = vst [vmem:[%s87 + $0x50] sm:%s79] %v128
        %v130 = vld [vmem:[%s86 + $0x58] sm:%s79]
        %131 = vst [vmem:[%s87 + $0x54] sm:%s79] %v130
        %v132 = vld [vmem:[%s86 + $0x4c] sm:%s79]
        %133 = vst [vmem:[%s87 + $0x58] sm:%s79] %v132
        %v134 = vld [vmem:[%s86 + $0x5c] sm:%s79]
        %135 = vst [vmem:[%s87 + $0x5c] sm:%s79] %v134
        %v136 = vld [vmem:[%s86 + $0x60] sm:%s79]
        %137 = vst [vmem:[%s87 + $0x60] sm:%s79] %v136
        %v138 = vld [vmem:[%s86 + $0x70] sm:%s79]
        %139 = vst [vmem:[%s87 + $0x64] sm:%s79] %v138
        %v140 = vld [vmem:[%s86 + $0x64] sm:%s79]
        %141 = vst [vmem:[%s87 + $0x68] sm:%s79] %v140
        %v142 = vld [vmem:[%s86 + $0x74] sm:%s79]
        %143 = vst [vmem:[%s87 + $0x6c] sm:%s79] %v142
        %v144 = vld [vmem:[%s86 + $0x68] sm:%s79]
        %145 = vst [vmem:[%s87 + $0x70] sm:%s79] %v144
        %v146 = vld [vmem:[%s86 + $0x78] sm:%s79]
        %147 = vst [vmem:[%s87 + $0x74] sm:%s79] %v146
        %v148 = vld [vmem:[%s86 + $0x6c] sm:%s79]
        %149 = vst [vmem:[%s87 + $0x78] sm:%s79] %v148
        %v150 = vld [vmem:[%s86 + $0x7c] sm:%s79]
        %151 = vst [vmem:[%s87 + $0x7c] sm:%s79] %v150
        %v152 = vld [vmem:[%s86 + $0x80] sm:%s79]
        %153 = vst [vmem:[%s87 + $0x80] sm:%s79] %v152
        %v154 = vld [vmem:[%s86 + $0x90] sm:%s79]
        %155 = vst [vmem:[%s87 + $0x84] sm:%s79] %v154
        %v156 = vld [vmem:[%s86 + $0x84] sm:%s79]
        %157 = vst [vmem:[%s87 + $0x88] sm:%s79] %v156
        %v158 = vld [vmem:[%s86 + $0x94] sm:%s79]
        %159 = vst [vmem:[%s87 + $0x8c] sm:%s79] %v158
        %v160 = vld [vmem:[%s86 + $0x88] sm:%s79]
        %161 = vst [vmem:[%s87 + $0x90] sm:%s79] %v160
        %v162 = vld [vmem:[%s86 + $0x98] sm:%s79]
        %163 = vst [vmem:[%s87 + $0x94] sm:%s79] %v162
        %v164 = vld [vmem:[%s86 + $0x8c] sm:%s79]
        %165 = vst [vmem:[%s87 + $0x98] sm:%s79] %v164
        %v166 = vld [vmem:[%s86 + $0x9c] sm:%s79]
        %167 = vst [vmem:[%s87 + $0x9c] sm:%s79] %v166
        %v168 = vld [vmem:[%s86 + $0xa0] sm:%s79]
        %169 = vst [vmem:[%s87 + $0xa0] sm:%s79] %v168
        %v170 = vld [vmem:[%s86 + $0xb0] sm:%s79]
        %171 = vst [vmem:[%s87 + $0xa4] sm:%s79] %v170
        %v172 = vld [vmem:[%s86 + $0xa4] sm:%s79]
        %173 = vst [vmem:[%s87 + $0xa8] sm:%s79] %v172
        %v174 = vld [vmem:[%s86 + $0xb4] sm:%s79]
        %175 = vst [vmem:[%s87 + $0xac] sm:%s79] %v174
        %v176 = vld [vmem:[%s86 + $0xa8] sm:%s79]
        %177 = vst [vmem:[%s87 + $0xb0] sm:%s79] %v176
        %v178 = vld [vmem:[%s86 + $0xb8] sm:%s79]
        %179 = vst [vmem:[%s87 + $0xb4] sm:%s79] %v178
        %v180 = vld [vmem:[%s86 + $0xac] sm:%s79]
        %181 = vst [vmem:[%s87 + $0xb8] sm:%s79] %v180
        %v182 = vld [vmem:[%s86 + $0xbc] sm:%s79]
        %183 = vst [vmem:[%s87 + $0xbc] sm:%s79] %v182
        %v184 = vld [vmem:[%s86 + $0xc0] sm:%s79]
        %185 = vst [vmem:[%s87 + $0xc0] sm:%s79] %v184
        %v186 = vld [vmem:[%s86 + $0xd0] sm:%s79]
        %187 = vst [vmem:[%s87 + $0xc4] sm:%s79] %v186
        %v188 = vld [vmem:[%s86 + $0xc4] sm:%s79]
        %189 = vst [vmem:[%s87 + $0xc8] sm:%s79] %v188
        %v190 = vld [vmem:[%s86 + $0xd4] sm:%s79]
        %191 = vst [vmem:[%s87 + $0xcc] sm:%s79] %v190
        %v192 = vld [vmem:[%s86 + $0xc8] sm:%s79]
        %193 = vst [vmem:[%s87 + $0xd0] sm:%s79] %v192
        %v194 = vld [vmem:[%s86 + $0xd8] sm:%s79]
        %195 = vst [vmem:[%s87 + $0xd4] sm:%s79] %v194
        %v196 = vld [vmem:[%s86 + $0xcc] sm:%s79]
        %197 = vst [vmem:[%s87 + $0xd8] sm:%s79] %v196
        %v198 = vld [vmem:[%s86 + $0xdc] sm:%s79]
        %199 = vst [vmem:[%s87 + $0xdc] sm:%s79] %v198
        %v200 = vld [vmem:[%s86 + $0xe0] sm:%s79]
        %201 = vst [vmem:[%s87 + $0xe0] sm:%s79] %v200
        %v202 = vld [vmem:[%s86 + $0xf0] sm:%s79]
        %203 = vst [vmem:[%s87 + $0xe4] sm:%s79] %v202
        %v204 = vld [vmem:[%s86 + $0xe4] sm:%s79]
        %205 = vst [vmem:[%s87 + $0xe8] sm:%s79] %v204
        %v206 = vld [vmem:[%s86 + $0xf4] sm:%s79]
        %207 = vst [vmem:[%s87 + $0xec] sm:%s79] %v206
        %v208 = vld [vmem:[%s86 + $0xe8] sm:%s79]
        %209 = vst [vmem:[%s87 + $0xf0] sm:%s79] %v208
        %v210 = vld [vmem:[%s86 + $0xf8] sm:%s79]
        %211 = vst [vmem:[%s87 + $0xf4] sm:%s79] %v210
        %v212 = vld [vmem:[%s86 + $0xec] sm:%s79]
        %213 = vst [vmem:[%s87 + $0xf8] sm:%s79] %v212
        %v214 = vld [vmem:[%s86 + $0xfc] sm:%s79]
        %215 = vst [vmem:[%s87 + $0xfc] sm:%s79] %v214
        %v216 = vld [vmem:[%s86 + $0x100] sm:%s79]
        %217 = vst [vmem:[%s87 + $0x100] sm:%s79] %v216
        %v218 = vld [vmem:[%s86 + $0x110] sm:%s79]
        %219 = vst [vmem:[%s87 + $0x104] sm:%s79] %v218
        %v220 = vld [vmem:[%s86 + $0x104] sm:%s79]
        %221 = vst [vmem:[%s87 + $0x108] sm:%s79] %v220
        %v222 = vld [vmem:[%s86 + $0x114] sm:%s79]
        %223 = vst [vmem:[%s87 + $0x10c] sm:%s79] %v222
        %v224 = vld [vmem:[%s86 + $0x108] sm:%s79]
        %225 = vst [vmem:[%s87 + $0x110] sm:%s79] %v224
        %v226 = vld [vmem:[%s86 + $0x118] sm:%s79]
        %227 = vst [vmem:[%s87 + $0x114] sm:%s79] %v226
        %v228 = vld [vmem:[%s86 + $0x10c] sm:%s79]
        %229 = vst [vmem:[%s87 + $0x118] sm:%s79] %v228
        %v230 = vld [vmem:[%s86 + $0x11c] sm:%s79]
        %231 = vst [vmem:[%s87 + $0x11c] sm:%s79] %v230
        %v232 = vld [vmem:[%s86 + $0x120] sm:%s79]
        %233 = vst [vmem:[%s87 + $0x120] sm:%s79] %v232
        %v234 = vld [vmem:[%s86 + $0x130] sm:%s79]
        %235 = vst [vmem:[%s87 + $0x124] sm:%s79] %v234
        %v236 = vld [vmem:[%s86 + $0x124] sm:%s79]
        %237 = vst [vmem:[%s87 + $0x128] sm:%s79] %v236
        %v238 = vld [vmem:[%s86 + $0x134] sm:%s79]
        %239 = vst [vmem:[%s87 + $0x12c] sm:%s79] %v238
        %v240 = vld [vmem:[%s86 + $0x128] sm:%s79]
        %241 = vst [vmem:[%s87 + $0x130] sm:%s79] %v240
        %v242 = vld [vmem:[%s86 + $0x138] sm:%s79]
        %243 = vst [vmem:[%s87 + $0x134] sm:%s79] %v242
        %v244 = vld [vmem:[%s86 + $0x12c] sm:%s79]
        %245 = vst [vmem:[%s87 + $0x138] sm:%s79] %v244
        %v246 = vld [vmem:[%s86 + $0x13c] sm:%s79]
        %247 = vst [vmem:[%s87 + $0x13c] sm:%s79] %v246
        %v248 = vld [vmem:[%s86 + $0x140] sm:%s79]
        %249 = vst [vmem:[%s87 + $0x140] sm:%s79] %v248
        %v250 = vld [vmem:[%s86 + $0x150] sm:%s79]
        %251 = vst [vmem:[%s87 + $0x144] sm:%s79] %v250
        %v252 = vld [vmem:[%s86 + $0x144] sm:%s79]
        %253 = vst [vmem:[%s87 + $0x148] sm:%s79] %v252
        %v254 = vld [vmem:[%s86 + $0x154] sm:%s79]
        %255 = vst [vmem:[%s87 + $0x14c] sm:%s79] %v254
        %v256 = vld [vmem:[%s86 + $0x148] sm:%s79]
        %257 = vst [vmem:[%s87 + $0x150] sm:%s79] %v256
        %v258 = vld [vmem:[%s86 + $0x158] sm:%s79]
        %259 = vst [vmem:[%s87 + $0x154] sm:%s79] %v258
        %v260 = vld [vmem:[%s86 + $0x14c] sm:%s79]
        %261 = vst [vmem:[%s87 + $0x158] sm:%s79] %v260
        %v262 = vld [vmem:[%s86 + $0x15c] sm:%s79]
        %263 = vst [vmem:[%s87 + $0x15c] sm:%s79] %v262
        %v264 = vld [vmem:[%s86 + $0x160] sm:%s79]
        %265 = vst [vmem:[%s87 + $0x160] sm:%s79] %v264
        %v266 = vld [vmem:[%s86 + $0x170] sm:%s79]
        %267 = vst [vmem:[%s87 + $0x164] sm:%s79] %v266
        %v268 = vld [vmem:[%s86 + $0x164] sm:%s79]
        %269 = vst [vmem:[%s87 + $0x168] sm:%s79] %v268
        %v270 = vld [vmem:[%s86 + $0x174] sm:%s79]
        %271 = vst [vmem:[%s87 + $0x16c] sm:%s79] %v270
        %v272 = vld [vmem:[%s86 + $0x168] sm:%s79]
        %273 = vst [vmem:[%s87 + $0x170] sm:%s79] %v272
        %v274 = vld [vmem:[%s86 + $0x178] sm:%s79]
        %275 = vst [vmem:[%s87 + $0x174] sm:%s79] %v274
        %v276 = vld [vmem:[%s86 + $0x16c] sm:%s79]
        %277 = vst [vmem:[%s87 + $0x178] sm:%s79] %v276
        %v278 = vld [vmem:[%s86 + $0x17c] sm:%s79]
        %279 = vst [vmem:[%s87 + $0x17c] sm:%s79] %v278
        %v280 = vld [vmem:[%s86 + $0x180] sm:%s79]
        %281 = vst [vmem:[%s87 + $0x180] sm:%s79] %v280
        %v282 = vld [vmem:[%s86 + $0x190] sm:%s79]
        %283 = vst [vmem:[%s87 + $0x184] sm:%s79] %v282
        %v284 = vld [vmem:[%s86 + $0x184] sm:%s79]
        %285 = vst [vmem:[%s87 + $0x188] sm:%s79] %v284
        %v286 = vld [vmem:[%s86 + $0x194] sm:%s79]
        %287 = vst [vmem:[%s87 + $0x18c] sm:%s79] %v286
        %v288 = vld [vmem:[%s86 + $0x188] sm:%s79]
        %289 = vst [vmem:[%s87 + $0x190] sm:%s79] %v288
        %v290 = vld [vmem:[%s86 + $0x198] sm:%s79]
        %291 = vst [vmem:[%s87 + $0x194] sm:%s79] %v290
        %v292 = vld [vmem:[%s86 + $0x18c] sm:%s79]
        %293 = vst [vmem:[%s87 + $0x198] sm:%s79] %v292
        %v294 = vld [vmem:[%s86 + $0x19c] sm:%s79]
        %295 = vst [vmem:[%s87 + $0x19c] sm:%s79] %v294
        %v296 = vld [vmem:[%s86 + $0x1a0] sm:%s79]
        %297 = vst [vmem:[%s87 + $0x1a0] sm:%s79] %v296
        %v298 = vld [vmem:[%s86 + $0x1b0] sm:%s79]
        %299 = vst [vmem:[%s87 + $0x1a4] sm:%s79] %v298
        %v300 = vld [vmem:[%s86 + $0x1a4] sm:%s79]
        %301 = vst [vmem:[%s87 + $0x1a8] sm:%s79] %v300
        %v302 = vld [vmem:[%s86 + $0x1b4] sm:%s79]
        %303 = vst [vmem:[%s87 + $0x1ac] sm:%s79] %v302
        %v304 = vld [vmem:[%s86 + $0x1a8] sm:%s79]
        %305 = vst [vmem:[%s87 + $0x1b0] sm:%s79] %v304
        %v306 = vld [vmem:[%s86 + $0x1b8] sm:%s79]
        %307 = vst [vmem:[%s87 + $0x1b4] sm:%s79] %v306
        %v308 = vld [vmem:[%s86 + $0x1ac] sm:%s79]
        %309 = vst [vmem:[%s87 + $0x1b8] sm:%s79] %v308
        %v310 = vld [vmem:[%s86 + $0x1bc] sm:%s79]
        %311 = vst [vmem:[%s87 + $0x1bc] sm:%s79] %v310
        %v312 = vld [vmem:[%s86 + $0x1c0] sm:%s79]
        %313 = vst [vmem:[%s87 + $0x1c0] sm:%s79] %v312
        %v314 = vld [vmem:[%s86 + $0x1d0] sm:%s79]
        %315 = vst [vmem:[%s87 + $0x1c4] sm:%s79] %v314
        %v316 = vld [vmem:[%s86 + $0x1c4] sm:%s79]
        %317 = vst [vmem:[%s87 + $0x1c8] sm:%s79] %v316
        %v318 = vld [vmem:[%s86 + $0x1d4] sm:%s79]
        %319 = vst [vmem:[%s87 + $0x1cc] sm:%s79] %v318
        %v320 = vld [vmem:[%s86 + $0x1c8] sm:%s79]
        %321 = vst [vmem:[%s87 + $0x1d0] sm:%s79] %v320
        %v322 = vld [vmem:[%s86 + $0x1d8] sm:%s79]
        %323 = vst [vmem:[%s87 + $0x1d4] sm:%s79] %v322
        %v324 = vld [vmem:[%s86 + $0x1cc] sm:%s79]
        %325 = vst [vmem:[%s87 + $0x1d8] sm:%s79] %v324
        %v326 = vld [vmem:[%s86 + $0x1dc] sm:%s79]
        %327 = vst [vmem:[%s87 + $0x1dc] sm:%s79] %v326
        %v328 = vld [vmem:[%s86 + $0x1e0] sm:%s79]
        %329 = vst [vmem:[%s87 + $0x1e0] sm:%s79] %v328
        %v330 = vld [vmem:[%s86 + $0x1f0] sm:%s79]
        %331 = vst [vmem:[%s87 + $0x1e4] sm:%s79] %v330
        %v332 = vld [vmem:[%s86 + $0x1e4] sm:%s79]
        %333 = vst [vmem:[%s87 + $0x1e8] sm:%s79] %v332
        %v334 = vld [vmem:[%s86 + $0x1f4] sm:%s79]
        %335 = vst [vmem:[%s87 + $0x1ec] sm:%s79] %v334
        %v336 = vld [vmem:[%s86 + $0x1e8] sm:%s79]
        %337 = vst [vmem:[%s87 + $0x1f0] sm:%s79] %v336
        %v338 = vld [vmem:[%s86 + $0x1f8] sm:%s79]
        %339 = vst [vmem:[%s87 + $0x1f4] sm:%s79] %v338
        %v340 = vld [vmem:[%s86 + $0x1ec] sm:%s79]
        %341 = vst [vmem:[%s87 + $0x1f8] sm:%s79] %v340
        %v342 = vld [vmem:[%s86 + $0x1fc] sm:%s79]
        %343 = vst [vmem:[%s87 + $0x1fc] sm:%s79] %v342
      $region54: #{tpu_custom_call.1} parent=48 // loop_footer
        %s85 = sadd.s32 1, %s81
      $region55: #{tpu_custom_call.1} parent=48 // loop_footer_branch
        %80 = sbr.rel target = $region51
      $region56: #{tpu_custom_call.1} parent=48 // loop_exit
        _
    $region49: #{tpu_custom_call.1} parent=1 // pred_fallthru
      _
    // Predicated region
    $region75: #{tpu_custom_call.1} parent=1 // pred_check
      _
    $region76: #{tpu_custom_call.1} parent=1 // pred_check_branch
      %629 = sbr.rel (0) target = $region78
    $region77: #{tpu_custom_call.1} parent=1 // pred_region
      %630 = vsyncadd [#allocation4], 8192
    $region78: #{tpu_custom_call.1} parent=1 // pred_fallthru
      _
    %s631 = scalar_lea.sflag [#allocation4], 1
    %s633 = sshll.u32 1, 14
    %s634 = sxor.u32 4294967295, %s633
    %s636 = sld [smem:[#allocation0]]
    %s637 = sadd.s32 2, %s636
    %s639 = sshll.u32 7, 26
    %s640 = sxor.u32 4294967295, %s639
    %s641 = sand.u32 0, %s640
    %s642 = sshll.u32 %s637, 26
    %s643 = sor.u32 %s641, %s642
    %s644 = sshll.u32 [#allocation3], 4
    %s645 = int_to_ptr.vmem [resolvable:$true] %s644
    %648 = sst [smem:[#allocation15]] 256
    %s649 = scalar_lea.smem [#allocation15], 1
    %650 = sst [smem:[%s649]] 256
    %s651 = scalar_lea.smem [#allocation15], 2
    %652 = sst [smem:[%s651]] 2
    %s653 = scalar_lea.smem [#allocation15], 3
    %654 = sst [smem:[%s653]] 64
    %s655 = scalar_lea.smem [#allocation15], 4
    %656 = sst [smem:[%s655]] 128
    %s657 = scalar_lea.smem [#allocation15], 5
    %658 = sst [smem:[%s657]] 2
    %s659 = scalar_lea.smem [#allocation15], 6
    %660 = sst [smem:[%s659]] 128
    %s661 = scalar_lea.smem [#allocation15], 7
    %662 = sst [smem:[%s661]] 64
    %s663 = scalar_lea.smem [#allocation15], 8
    %664 = sst [smem:[%s663]] 4
    %666 = dma.general %s8, 8192, %s645, %s631, [#allocation14], [#allocation15], %s643, 0
    %s667 = sld [smem:[#allocation5]]
    %s668 = sld [smem:[#allocation5 + $0x1]]
    %s669 = sld [smem:[#allocation5 + $0x2]]
    %s670 = sld [smem:[#allocation5 + $0x3]]
    %v671 = vld [vmem:[%s1] sm:$0x3]
    %v672 = vpack.c.bf16 %v671, %v671
    %v673 = vld [vmem:[%s2] sm:$0xf]
    %v674 = vld [vmem:[%s2 + $0x4] sm:$0xf]
    %v675 = vld [vmem:[#allocation9] ss:$0 sm:$0xff]
    %v678 = vunpack.c.l.b16 %v673
    %v679 = vunpack.c.l.b16 %v674
    %v680 = vpack.c.b16 %v679, %v678
    %vm682 = vcmask 130048
    %v684 = vsel %vm682, %v672, 0
    %686 = vmatprep.subr.bf16.mxu0 0
    %687 = vmatpush1.bf16.msra.mxu0 %v680
    %688 = vmatprep.subr.bf16.mxu0 0
    %689 = vmatpush1.bf16.msra.mxu0 0
    %690 = vmatprep.subr.bf16.mxu0 0
    %691 = vmatpush1.bf16.msra.mxu0 0
    %692 = vmatprep.subr.bf16.mxu0 0
    %693 = vmatpush1.bf16.msra.mxu0 0
    %694 = vmatprep.subr.bf16.mxu0 0
    %695 = vmatpush1.bf16.msra.mxu0 0
    %696 = vmatprep.subr.bf16.mxu0 0
    %697 = vmatpush1.bf16.msra.mxu0 0
    %698 = vmatprep.subr.bf16.mxu0 0
    %699 = vmatpush1.bf16.msra.mxu0 0
    %700 = vmatprep.subr.bf16.mxu0 0
    %701 = vmatpush1.bf16.msra.mxu0 0
    %702 = vmatprep.subr.bf16.mxu0 0
    %703 = vmatpush1.bf16.msra.mxu0 0
    %704 = vmatprep.subr.bf16.mxu0 0
    %705 = vmatpush1.bf16.msra.mxu0 0
    %706 = vmatprep.subr.bf16.mxu0 0
    %707 = vmatpush1.bf16.msra.mxu0 0
    %708 = vmatprep.subr.bf16.mxu0 0
    %709 = vmatpush1.bf16.msra.mxu0 0
    %710 = vmatprep.subr.bf16.mxu0 0
    %711 = vmatpush1.bf16.msra.mxu0 0
    %712 = vmatprep.subr.bf16.mxu0 0
    %713 = vmatpush1.bf16.msra.mxu0 0
    %714 = vmatprep.subr.bf16.mxu0 0
    %715 = vmatpush1.bf16.msra.mxu0 0
    %716 = vmatprep.subr.bf16.mxu0 0
    %717 = vmatpush1.bf16.msra.mxu0 0
    %718 = vmatprep.mubr.bf16.mxu0 0
    %719 = vmatmul.mubr.bf16.gmra.mrb[0].mxu0 %v684
    %v720 = vpop.f32.mrb[0].mxu0
    %v721 = vadd.f32 %v675, %v720
    %v722 = vpop.f32.mrb[0].mxu0
    %v723 = vpop.f32.mrb[0].mxu0
    %v724 = vpop.f32.mrb[0].mxu0
    %725 = vdwg.mxu0
    %vm726 = vcmask 1041408
    %v727 = vsel %vm726, %v721, 0.0
    %v728 = vrot.slane %v727, 4
    %v729 = vadd.f32 %v727, %v728
    %v730 = vrot.slane %v729, 2
    %v731 = vadd.f32 %v729, %v730
    %v732 = vrot.slane %v731, 1
    %v733 = vadd.f32 %v731, %v732
    %v734 = vrcp.pop 2.0
    %v735 = vmul.f32 %v733, %v734
    %v736 = vsub.f32 %v721, %v735
    %v737 = vmul.f32 %v736, %v736
    %v738 = vsel %vm726, %v737, 0.0
    %v739 = vrot.slane %v738, 4
    %v740 = vadd.f32 %v738, %v739
    %v741 = vrot.slane %v740, 2
    %v742 = vadd.f32 %v740, %v741
    %v743 = vrot.slane %v742, 1
    %v744 = vadd.f32 %v742, %v743
    %v745 = vmul.f32 %v744, %v734
    %v746 = vld [vmem:[#allocation9 + $0x1] ss:$0 sm:$0xff]
    %v747 = vadd.f32 %v745, 1e-05
    %v748 = vrsqrt.pop %v747
    %v749 = vmul.f32 %v746, %v748
    %v750 = vld [vmem:[#allocation9 + $0x2] ss:$0 sm:$0xff]
    %v751 = vmul.f32 %v735, %v749
    %v752 = vsub.f32 %v750, %v751
    %v753 = vmul.f32 %v721, %v749
    %v754 = vadd.f32 %v753, %v752
    %v755 = vsel %vm726, %v754, -inf
    %756 = vmax.xlane.f32.xlu0 %v755
    %v757 = vpop.xlane.xlu0 %756
    %v758 = vsub.f32 %v754, %v757
    %v759 = vmul.f32 %v758, 1.442695
    %v760 = vpow.pop %v759
    %v761 = vld [vmem:[#allocation9 + $0x3] ss:$0 sm:$0xff]
    %v762 = vmul.f32 %v760, %v761
    %v763 = vsel %vm726, %v762, 0.0
    %764 = vadd.xlane.f32.xlu0 %v763
    %v765 = vpop.xlane.xlu0 %764
    %v766 = vrcp.pop %v765
    %v767 = vmul.f32 %v765, %v766
    %v768 = vsub.f32 2.0, %v767
    %v769 = vmul.f32 %v766, %v768
    %v770 = vmul.f32 %v762, %v769
    %v771 = vpack.c.bf16 %v770, %v770
    %v772 = vld [vmem:[#allocation10] sm:$0xff]
    %v773 = vld [vmem:[#allocation10 + $0x8] sm:$0xff]
    %v774 = vld [vmem:[#allocation10 + $0x10] sm:$0xff]
    %v775 = vld [vmem:[#allocation10 + $0x18] sm:$0xff]
    %v776 = vld [vmem:[#allocation10 + $0x20] sm:$0xff]
    %v777 = vld [vmem:[#allocation10 + $0x28] sm:$0xff]
    %v778 = vld [vmem:[#allocation10 + $0x30] sm:$0xff]
    %v779 = vld [vmem:[#allocation10 + $0x38] sm:$0xff]
    %v780 = vld [vmem:[#allocation10 + $0x40] sm:$0xff]
    %v781 = vld [vmem:[#allocation10 + $0x48] sm:$0xff]
    %v782 = vld [vmem:[#allocation10 + $0x50] sm:$0xff]
    %v783 = vld [vmem:[#allocation10 + $0x58] sm:$0xff]
    %v784 = vld [vmem:[#allocation10 + $0x60] sm:$0xff]
    %v785 = vld [vmem:[#allocation10 + $0x68] sm:$0xff]
    %v786 = vld [vmem:[#allocation10 + $0x70] sm:$0xff]
    %v787 = vld [vmem:[#allocation10 + $0x78] sm:$0xff]
    %s788 = scalar_lea.vmem [#allocation9], 4
    %v789 = vld [vmem:[%s788] ss:$8 sm:$0x3]
    %v791 = vlaneseq
    %v792 = vshrl.u32 %v791, 7
    %v793 = vsub.s32 0, %v792
    %v794 = vrot.slane %v789, %v793
    %v795 = vlaneseq
    %v796 = vshrl.u32 %v795, 7
    %v797 = vsub.s32 1, %v796
    %v798 = vrot.slane %v789, %v797
    %v817 = vunpack.c.l.b16 %v772
    %v818 = vunpack.c.h.b16 %v772
    %v819 = vunpack.c.l.b16 %v773
    %v820 = vunpack.c.h.b16 %v773
    %v821 = vunpack.c.l.b16 %v774
    %v822 = vunpack.c.h.b16 %v774
    %v823 = vunpack.c.l.b16 %v775
    %v824 = vunpack.c.h.b16 %v775
    %v825 = vunpack.c.l.b16 %v776
    %v826 = vunpack.c.h.b16 %v776
    %v827 = vunpack.c.l.b16 %v777
    %v828 = vunpack.c.h.b16 %v777
    %v829 = vunpack.c.l.b16 %v778
    %v830 = vunpack.c.h.b16 %v778
    %v831 = vunpack.c.l.b16 %v779
    %v832 = vunpack.c.h.b16 %v779
    %v833 = vunpack.c.l.b16 %v780
    %v834 = vunpack.c.h.b16 %v780
    %v835 = vunpack.c.l.b16 %v781
    %v836 = vunpack.c.h.b16 %v781
    %v837 = vunpack.c.l.b16 %v782
    %v838 = vunpack.c.h.b16 %v782
    %v839 = vunpack.c.l.b16 %v783
    %v840 = vunpack.c.h.b16 %v783
    %v841 = vunpack.c.l.b16 %v784
    %v842 = vunpack.c.h.b16 %v784
    %v843 = vunpack.c.l.b16 %v785
    %v844 = vunpack.c.h.b16 %v785
    %v845 = vunpack.c.l.b16 %v786
    %v846 = vunpack.c.h.b16 %v786
    %v847 = vunpack.c.l.b16 %v787
    %v848 = vunpack.c.h.b16 %v787
    %v849 = vpack.c.b16 %v819, %v817
    %v850 = vpack.c.b16 %v820, %v818
    %v851 = vpack.c.b16 %v823, %v821
    %v852 = vpack.c.b16 %v824, %v822
    %v853 = vpack.c.b16 %v827, %v825
    %v854 = vpack.c.b16 %v828, %v826
    %v855 = vpack.c.b16 %v831, %v829
    %v856 = vpack.c.b16 %v832, %v830
    %v857 = vpack.c.b16 %v835, %v833
    %v858 = vpack.c.b16 %v836, %v834
    %v859 = vpack.c.b16 %v839, %v837
    %v860 = vpack.c.b16 %v840, %v838
    %v861 = vpack.c.b16 %v843, %v841
    %v862 = vpack.c.b16 %v844, %v842
    %v863 = vpack.c.b16 %v847, %v845
    %v864 = vpack.c.b16 %v848, %v846
    %881 = vmatprep.subr.bf16.mxu0 %v850
    %882 = vmatpush1.bf16.msra.mxu0 %v849
    %883 = vmatprep.subr.bf16.mxu0 %v852
    %884 = vmatpush1.bf16.msra.mxu0 %v851
    %885 = vmatprep.subr.bf16.mxu0 %v854
    %886 = vmatpush1.bf16.msra.mxu0 %v853
    %887 = vmatprep.subr.bf16.mxu0 %v856
    %888 = vmatpush1.bf16.msra.mxu0 %v855
    %889 = vmatprep.subr.bf16.mxu0 %v858
    %890 = vmatpush1.bf16.msra.mxu0 %v857
    %891 = vmatprep.subr.bf16.mxu0 %v860
    %892 = vmatpush1.bf16.msra.mxu0 %v859
    %893 = vmatprep.subr.bf16.mxu0 %v862
    %894 = vmatpush1.bf16.msra.mxu0 %v861
    %895 = vmatprep.subr.bf16.mxu0 %v864
    %896 = vmatpush1.bf16.msra.mxu0 %v863
    %897 = vmatprep.subr.bf16.mxu0 0
    %898 = vmatpush1.bf16.msra.mxu0 0
    %899 = vmatprep.subr.bf16.mxu0 0
    %900 = vmatpush1.bf16.msra.mxu0 0
    %901 = vmatprep.subr.bf16.mxu0 0
    %902 = vmatpush1.bf16.msra.mxu0 0
    %903 = vmatprep.subr.bf16.mxu0 0
    %904 = vmatpush1.bf16.msra.mxu0 0
    %905 = vmatprep.subr.bf16.mxu0 0
    %906 = vmatpush1.bf16.msra.mxu0 0
    %907 = vmatprep.subr.bf16.mxu0 0
    %908 = vmatpush1.bf16.msra.mxu0 0
    %909 = vmatprep.subr.bf16.mxu0 0
    %910 = vmatpush1.bf16.msra.mxu0 0
    %911 = vmatprep.subr.bf16.mxu0 0
    %912 = vmatpush1.bf16.msra.mxu0 0
    %913 = vmatprep.mubr.bf16.mxu0 0
    %914 = vmatmul.mubr.bf16.gmra.mrb[0].mxu0 %v771
    %v915 = vpop.f32.mrb[0].mxu0
    %v916 = vadd.f32 %v794, %v915
    %v917 = vpop.f32.mrb[0].mxu0
    %v918 = vadd.f32 %v798, %v917
    %v919 = vpop.f32.mrb[0].mxu0
    %v920 = vpop.f32.mrb[0].mxu0
    %921 = vdwg.mxu0
    %v922 = vsel %vm726, %v916, 0.0
    %v923 = vrot.slane %v922, 4
    %v924 = vadd.f32 %v922, %v923
    %v925 = vrot.slane %v924, 2
    %v926 = vadd.f32 %v924, %v925
    %v927 = vrot.slane %v926, 1
    %v928 = vadd.f32 %v926, %v927
    %v929 = vsel %vm726, %v918, 0.0
    %v930 = vrot.slane %v929, 4
    %v931 = vadd.f32 %v929, %v930
    %v932 = vrot.slane %v931, 2
    %v933 = vadd.f32 %v931, %v932
    %v934 = vrot.slane %v933, 1
    %v935 = vadd.f32 %v933, %v934
    %v936 = vmul.f32 %v928, %v734
    %v937 = vmul.f32 %v935, %v734
    %v938 = vsub.f32 %v916, %v936
    %v939 = vsub.f32 %v918, %v937
    %v940 = vmul.f32 %v938, %v938
    %v941 = vmul.f32 %v939, %v939
    %v942 = vsel %vm726, %v940, 0.0
    %v943 = vrot.slane %v942, 4
    %v944 = vadd.f32 %v942, %v943
    %v945 = vrot.slane %v944, 2
    %v946 = vadd.f32 %v944, %v945
    %v947 = vrot.slane %v946, 1
    %v948 = vadd.f32 %v946, %v947
    %v949 = vsel %vm726, %v941, 0.0
    %v950 = vrot.slane %v949, 4
    %v951 = vadd.f32 %v949, %v950
    %v952 = vrot.slane %v951, 2
    %v953 = vadd.f32 %v951, %v952
    %v954 = vrot.slane %v953, 1
    %v955 = vadd.f32 %v953, %v954
    %v956 = vmul.f32 %v948, %v734
    %v957 = vmul.f32 %v955, %v734
    %s958 = scalar_lea.vmem [#allocation9], 5
    %v959 = vld [vmem:[%s958] ss:$8 sm:$0x3]
    %v960 = vadd.f32 %v956, 1e-05
    %v961 = vadd.f32 %v957, 1e-05
    %v962 = vrsqrt.pop %v960
    %v963 = vrsqrt.pop %v961
    %v966 = vcombine.low %v962, %v963
    %v968 = vunpack.c.l.s4 1966171168
    %v969 = vunpack.c.0.s8 %v968
    %v970 = vlaneseq
    %v971 = vshrl.u32 %v970, 7
    %v972 = vsub.s32 %v969, %v971
    %v973 = vrot.slane %v966, %v972
    %v975 = vunpack.c.l.s4 1966171168
    %v976 = vunpack.c.0.s8 %v975
    %v977 = vlaneseq
    %v978 = vshrl.u32 %v977, 7
    %v979 = vsub.s32 %v976, %v978
    %v980 = vrot.slane %v973, %v979
    %v982 = vmul.f32 %v959, %v980
    %s983 = scalar_lea.vmem [#allocation9], 6
    %v984 = vld [vmem:[%s983] ss:$8 sm:$0x3]
    %v986 = vlaneseq
    %v987 = vshrl.u32 %v986, 7
    %v988 = vsub.s32 0, %v987
    %v989 = vrot.slane %v982, %v988
    %v990 = vlaneseq
    %v991 = vshrl.u32 %v990, 7
    %v992 = vsub.s32 1, %v991
    %v993 = vrot.slane %v982, %v992
    %v996 = vmul.f32 %v936, %v989
    %v997 = vmul.f32 %v937, %v993
    %v1000 = vcombine.low %v996, %v997
    %v1002 = vunpack.c.l.s4 1966171168
    %v1003 = vunpack.c.0.s8 %v1002
    %v1004 = vlaneseq
    %v1005 = vshrl.u32 %v1004, 7
    %v1006 = vsub.s32 %v1003, %v1005
    %v1007 = vrot.slane %v1000, %v1006
    %v1009 = vunpack.c.l.s4 1966171168
    %v1010 = vunpack.c.0.s8 %v1009
    %v1011 = vlaneseq
    %v1012 = vshrl.u32 %v1011, 7
    %v1013 = vsub.s32 %v1010, %v1012
    %v1014 = vrot.slane %v1007, %v1013
    %v1016 = vsub.f32 %v984, %v1014
    %v1017 = vmul.f32 %v916, %v989
    %v1018 = vmul.f32 %v918, %v993
    %v1020 = vlaneseq
    %v1021 = vshrl.u32 %v1020, 7
    %v1022 = vsub.s32 0, %v1021
    %v1023 = vrot.slane %v1016, %v1022
    %v1024 = vlaneseq
    %v1025 = vshrl.u32 %v1024, 7
    %v1026 = vsub.s32 1, %v1025
    %v1027 = vrot.slane %v1016, %v1026
    %v1030 = vadd.f32 %v1017, %v1023
    %v1031 = vadd.f32 %v1018, %v1027
    %v1032 = vmax.f32 %v1030, 0.0
    %v1033 = vmax.f32 %v1031, 0.0
    %s1034 = smul.u32 4, 32
    %s1035 = smul.u32 %s1034, 4
    %s1036 = sshll.u32 %s1035, 4
    %1037 = dma.done [#allocation4], %s1036
    %v1038 = vpack.c.bf16 %v1032, %v1032
    %v1039 = vpack.c.bf16 %v1033, %v1033
    %v1040 = vld [vmem:[#allocation2] sm:$0xff]
    %v1041 = vld [vmem:[#allocation2 + $0x8] sm:$0xff]
    %v1042 = vld [vmem:[#allocation2 + $0x10] sm:$0xff]
    %v1043 = vld [vmem:[#allocation2 + $0x18] sm:$0xff]
    %v1044 = vld [vmem:[#allocation2 + $0x20] sm:$0xff]
    %v1045 = vld [vmem:[#allocation2 + $0x28] sm:$0xff]
    %v1046 = vld [vmem:[#allocation2 + $0x30] sm:$0xff]
    %v1047 = vld [vmem:[#allocation2 + $0x38] sm:$0xff]
    %v1048 = vld [vmem:[#allocation2 + $0x40] sm:$0xff]
    %v1049 = vld [vmem:[#allocation2 + $0x48] sm:$0xff]
    %v1050 = vld [vmem:[#allocation2 + $0x50] sm:$0xff]
    %v1051 = vld [vmem:[#allocation2 + $0x58] sm:$0xff]
    %v1052 = vld [vmem:[#allocation2 + $0x60] sm:$0xff]
    %v1053 = vld [vmem:[#allocation2 + $0x68] sm:$0xff]
    %v1054 = vld [vmem:[#allocation2 + $0x70] sm:$0xff]
    %v1055 = vld [vmem:[#allocation2 + $0x78] sm:$0xff]
    %v1056 = vld [vmem:[#allocation2 + $0x80] sm:$0xff]
    %v1057 = vld [vmem:[#allocation2 + $0x88] sm:$0xff]
    %v1058 = vld [vmem:[#allocation2 + $0x90] sm:$0xff]
    %v1059 = vld [vmem:[#allocation2 + $0x98] sm:$0xff]
    %v1060 = vld [vmem:[#allocation2 + $0xa0] sm:$0xff]
    %v1061 = vld [vmem:[#allocation2 + $0xa8] sm:$0xff]
    %v1062 = vld [vmem:[#allocation2 + $0xb0] sm:$0xff]
    %v1063 = vld [vmem:[#allocation2 + $0xb8] sm:$0xff]
    %v1064 = vld [vmem:[#allocation2 + $0xc0] sm:$0xff]
    %v1065 = vld [vmem:[#allocation2 + $0xc8] sm:$0xff]
    %v1066 = vld [vmem:[#allocation2 + $0xd0] sm:$0xff]
    %v1067 = vld [vmem:[#allocation2 + $0xd8] sm:$0xff]
    %v1068 = vld [vmem:[#allocation2 + $0xe0] sm:$0xff]
    %v1069 = vld [vmem:[#allocation2 + $0xe8] sm:$0xff]
    %v1070 = vld [vmem:[#allocation2 + $0xf0] sm:$0xff]
    %v1071 = vld [vmem:[#allocation2 + $0xf8] sm:$0xff]
    %v1072 = vld [vmem:[#allocation2 + $0x100] sm:$0xff]
    %v1073 = vld [vmem:[#allocation2 + $0x108] sm:$0xff]
    %v1074 = vld [vmem:[#allocation2 + $0x110] sm:$0xff]
    %v1075 = vld [vmem:[#allocation2 + $0x118] sm:$0xff]
    %v1076 = vld [vmem:[#allocation2 + $0x120] sm:$0xff]
    %v1077 = vld [vmem:[#allocation2 + $0x128] sm:$0xff]
    %v1078 = vld [vmem:[#allocation2 + $0x130] sm:$0xff]
    %v1079 = vld [vmem:[#allocation2 + $0x138] sm:$0xff]
    %v1080 = vld [vmem:[#allocation2 + $0x140] sm:$0xff]
    %v1081 = vld [vmem:[#allocation2 + $0x148] sm:$0xff]
    %v1082 = vld [vmem:[#allocation2 + $0x150] sm:$0xff]
    %v1083 = vld [vmem:[#allocation2 + $0x158] sm:$0xff]
    %v1084 = vld [vmem:[#allocation2 + $0x160] sm:$0xff]
    %v1085 = vld [vmem:[#allocation2 + $0x168] sm:$0xff]
    %v1086 = vld [vmem:[#allocation2 + $0x170] sm:$0xff]
    %v1087 = vld [vmem:[#allocation2 + $0x178] sm:$0xff]
    %v1088 = vld [vmem:[#allocation2 + $0x180] sm:$0xff]
    %v1089 = vld [vmem:[#allocation2 + $0x188] sm:$0xff]
    %v1090 = vld [vmem:[#allocation2 + $0x190] sm:$0xff]
    %v1091 = vld [vmem:[#allocation2 + $0x198] sm:$0xff]
    %v1092 = vld [vmem:[#allocation2 + $0x1a0] sm:$0xff]
    %v1093 = vld [vmem:[#allocation2 + $0x1a8] sm:$0xff]
    %v1094 = vld [vmem:[#allocation2 + $0x1b0] sm:$0xff]
    %v1095 = vld [vmem:[#allocation2 + $0x1b8] sm:$0xff]
    %v1096 = vld [vmem:[#allocation2 + $0x1c0] sm:$0xff]
    %v1097 = vld [vmem:[#allocation2 + $0x1c8] sm:$0xff]
    %v1098 = vld [vmem:[#allocation2 + $0x1d0] sm:$0xff]
    %v1099 = vld [vmem:[#allocation2 + $0x1d8] sm:$0xff]
    %v1100 = vld [vmem:[#allocation2 + $0x1e0] sm:$0xff]
    %v1101 = vld [vmem:[#allocation2 + $0x1e8] sm:$0xff]
    %v1102 = vld [vmem:[#allocation2 + $0x1f0] sm:$0xff]
    %v1103 = vld [vmem:[#allocation2 + $0x1f8] sm:$0xff]
    %s1104 = scalar_lea.vmem [#allocation9], 7
    %v1105 = vld [vmem:[%s1104] ss:$8 sm:$0xf]
    %v1107 = vlaneseq
    %v1108 = vshrl.u32 %v1107, 7
    %v1109 = vsub.s32 0, %v1108
    %v1110 = vrot.slane %v1105, %v1109
    %v1111 = vlaneseq
    %v1112 = vshrl.u32 %v1111, 7
    %v1113 = vsub.s32 1, %v1112
    %v1114 = vrot.slane %v1105, %v1113
    %v1115 = vlaneseq
    %v1116 = vshrl.u32 %v1115, 7
    %v1117 = vsub.s32 2, %v1116
    %v1118 = vrot.slane %v1105, %v1117
    %v1119 = vlaneseq
    %v1120 = vshrl.u32 %v1119, 7
    %v1121 = vsub.s32 3, %v1120
    %v1122 = vrot.slane %v1105, %v1121
    %1127 = vmatprep.subr.bf16.mxu0 %v1041
    %1128 = vmatpush1.bf16.msra.mxu0 %v1040
    %1129 = vmatprep.subr.bf16.mxu0 %v1045
    %1130 = vmatpush1.bf16.msra.mxu0 %v1044
    %1131 = vmatprep.subr.bf16.mxu0 %v1049
    %1132 = vmatpush1.bf16.msra.mxu0 %v1048
    %1133 = vmatprep.subr.bf16.mxu0 %v1053
    %1134 = vmatpush1.bf16.msra.mxu0 %v1052
    %1135 = vmatprep.subr.bf16.mxu0 %v1057
    %1136 = vmatpush1.bf16.msra.mxu0 %v1056
    %1137 = vmatprep.subr.bf16.mxu0 %v1061
    %1138 = vmatpush1.bf16.msra.mxu0 %v1060
    %1139 = vmatprep.subr.bf16.mxu0 %v1065
    %1140 = vmatpush1.bf16.msra.mxu0 %v1064
    %1141 = vmatprep.subr.bf16.mxu0 %v1069
    %1142 = vmatpush1.bf16.msra.mxu0 %v1068
    %1143 = vmatprep.subr.bf16.mxu0 %v1073
    %1144 = vmatpush1.bf16.msra.mxu0 %v1072
    %1145 = vmatprep.subr.bf16.mxu0 %v1077
    %1146 = vmatpush1.bf16.msra.mxu0 %v1076
    %1147 = vmatprep.subr.bf16.mxu0 %v1081
    %1148 = vmatpush1.bf16.msra.mxu0 %v1080
    %1149 = vmatprep.subr.bf16.mxu0 %v1085
    %1150 = vmatpush1.bf16.msra.mxu0 %v1084
    %1151 = vmatprep.subr.bf16.mxu0 %v1089
    %1152 = vmatpush1.bf16.msra.mxu0 %v1088
    %1153 = vmatprep.subr.bf16.mxu0 %v1093
    %1154 = vmatpush1.bf16.msra.mxu0 %v1092
    %1155 = vmatprep.subr.bf16.mxu0 %v1097
    %1156 = vmatpush1.bf16.msra.mxu0 %v1096
    %1157 = vmatprep.subr.bf16.mxu0 %v1101
    %1158 = vmatpush1.bf16.msra.mxu0 %v1100
    %1159 = vmatprep.mubr.bf16.mxu0 %v1039
    %1160 = vmatmul.mubr.bf16.gmra.mrb[0].mxu0 %v1038
    %v1161 = vpop.f32.mrb[0].mxu0
    %v1162 = vadd.f32 %v1110, %v1161
    %v1163 = vpop.f32.mrb[0].mxu0
    %v1164 = vadd.f32 %v1114, %v1163
    %v1165 = vpop.f32.mrb[0].mxu0
    %v1166 = vpop.f32.mrb[0].mxu0
    %1167 = vdwg.mxu0
    %1168 = vmatprep.subr.bf16.mxu0 %v1043
    %1169 = vmatpush1.bf16.msra.mxu0 %v1042
    %1170 = vmatprep.subr.bf16.mxu0 %v1047
    %1171 = vmatpush1.bf16.msra.mxu0 %v1046
    %1172 = vmatprep.subr.bf16.mxu0 %v1051
    %1173 = vmatpush1.bf16.msra.mxu0 %v1050
    %1174 = vmatprep.subr.bf16.mxu0 %v1055
    %1175 = vmatpush1.bf16.msra.mxu0 %v1054
    %1176 = vmatprep.subr.bf16.mxu0 %v1059
    %1177 = vmatpush1.bf16.msra.mxu0 %v1058
    %1178 = vmatprep.subr.bf16.mxu0 %v1063
    %1179 = vmatpush1.bf16.msra.mxu0 %v1062
    %1180 = vmatprep.subr.bf16.mxu0 %v1067
    %1181 = vmatpush1.bf16.msra.mxu0 %v1066
    %1182 = vmatprep.subr.bf16.mxu0 %v1071
    %1183 = vmatpush1.bf16.msra.mxu0 %v1070
    %1184 = vmatprep.subr.bf16.mxu0 %v1075
    %1185 = vmatpush1.bf16.msra.mxu0 %v1074
    %1186 = vmatprep.subr.bf16.mxu0 %v1079
    %1187 = vmatpush1.bf16.msra.mxu0 %v1078
    %1188 = vmatprep.subr.bf16.mxu0 %v1083
    %1189 = vmatpush1.bf16.msra.mxu0 %v1082
    %1190 = vmatprep.subr.bf16.mxu0 %v1087
    %1191 = vmatpush1.bf16.msra.mxu0 %v1086
    %1192 = vmatprep.subr.bf16.mxu0 %v1091
    %1193 = vmatpush1.bf16.msra.mxu0 %v1090
    %1194 = vmatprep.subr.bf16.mxu0 %v1095
    %1195 = vmatpush1.bf16.msra.mxu0 %v1094
    %1196 = vmatprep.subr.bf16.mxu0 %v1099
    %1197 = vmatpush1.bf16.msra.mxu0 %v1098
    %1198 = vmatprep.subr.bf16.mxu0 %v1103
    %1199 = vmatpush1.bf16.msra.mxu0 %v1102
    %1200 = vmatprep.mubr.bf16.mxu0 %v1039
    %1201 = vmatmul.mubr.bf16.gmra.mrb[0].mxu0 %v1038
    %v1202 = vpop.f32.mrb[0].mxu0
    %v1203 = vadd.f32 %v1118, %v1202
    %v1204 = vpop.f32.mrb[0].mxu0
    %v1205 = vadd.f32 %v1122, %v1204
    %v1206 = vpop.f32.mrb[0].mxu0
    %v1207 = vpop.f32.mrb[0].mxu0
    %1208 = vdwg.mxu0
    %v1209 = vsel %vm726, %v1162, 0.0
    %v1210 = vrot.slane %v1209, 4
    %v1211 = vadd.f32 %v1209, %v1210
    %v1212 = vrot.slane %v1211, 2
    %v1213 = vadd.f32 %v1211, %v1212
    %v1214 = vrot.slane %v1213, 1
    %v1215 = vadd.f32 %v1213, %v1214
    %v1216 = vsel %vm726, %v1164, 0.0
    %v1217 = vrot.slane %v1216, 4
    %v1218 = vadd.f32 %v1216, %v1217
    %v1219 = vrot.slane %v1218, 2
    %v1220 = vadd.f32 %v1218, %v1219
    %v1221 = vrot.slane %v1220, 1
    %v1222 = vadd.f32 %v1220, %v1221
    %v1223 = vsel %vm726, %v1203, 0.0
    %v1224 = vrot.slane %v1223, 4
    %v1225 = vadd.f32 %v1223, %v1224
    %v1226 = vrot.slane %v1225, 2
    %v1227 = vadd.f32 %v1225, %v1226
    %v1228 = vrot.slane %v1227, 1
    %v1229 = vadd.f32 %v1227, %v1228
    %v1230 = vsel %vm726, %v1205, 0.0
    %v1231 = vrot.slane %v1230, 4
    %v1232 = vadd.f32 %v1230, %v1231
    %v1233 = vrot.slane %v1232, 2
    %v1234 = vadd.f32 %v1232, %v1233
    %v1235 = vrot.slane %v1234, 1
    %v1236 = vadd.f32 %v1234, %v1235
    %v1237 = vld [vmem:[%s5] sm:$0xff]
    %v1238 = vld [vmem:[%s5 + $0x8] sm:$0xff]
    %v1239 = vld [vmem:[%s5 + $0x10] sm:$0xff]
    %v1240 = vld [vmem:[%s5 + $0x18] sm:$0xff]
    %v1241 = vld [vmem:[%s5 + $0x20] sm:$0xff]
    %v1242 = vld [vmem:[%s5 + $0x28] sm:$0xff]
    %v1243 = vld [vmem:[%s5 + $0x30] sm:$0xff]
    %v1244 = vld [vmem:[%s5 + $0x38] sm:$0xff]
    %v1245 = vld [vmem:[%s5 + $0x40] sm:$0xff]
    %v1246 = vld [vmem:[%s5 + $0x48] sm:$0xff]
    %v1247 = vld [vmem:[%s5 + $0x50] sm:$0xff]
    %v1248 = vld [vmem:[%s5 + $0x58] sm:$0xff]
    %v1249 = vld [vmem:[%s5 + $0x60] sm:$0xff]
    %v1250 = vld [vmem:[%s5 + $0x68] sm:$0xff]
    %v1251 = vld [vmem:[%s5 + $0x70] sm:$0xff]
    %v1252 = vld [vmem:[%s5 + $0x78] sm:$0xff]
    %v1253 = vld [vmem:[%s5 + $0x80] sm:$0xff]
    %v1254 = vld [vmem:[%s5 + $0x88] sm:$0xff]
    %v1255 = vld [vmem:[%s5 + $0x90] sm:$0xff]
    %v1256 = vld [vmem:[%s5 + $0x98] sm:$0xff]
    %v1257 = vld [vmem:[%s5 + $0xa0] sm:$0xff]
    %v1258 = vld [vmem:[%s5 + $0xa8] sm:$0xff]
    %v1259 = vld [vmem:[%s5 + $0xb0] sm:$0xff]
    %v1260 = vld [vmem:[%s5 + $0xb8] sm:$0xff]
    %v1261 = vld [vmem:[%s5 + $0xc0] sm:$0xff]
    %v1262 = vld [vmem:[%s5 + $0xc8] sm:$0xff]
    %v1263 = vld [vmem:[%s5 + $0xd0] sm:$0xff]
    %v1264 = vld [vmem:[%s5 + $0xd8] sm:$0xff]
    %v1265 = vld [vmem:[%s5 + $0xe0] sm:$0xff]
    %v1266 = vld [vmem:[%s5 + $0xe8] sm:$0xff]
    %v1267 = vld [vmem:[%s5 + $0xf0] sm:$0xff]
    %v1268 = vld [vmem:[%s5 + $0xf8] sm:$0xff]
    %v1269 = vld [vmem:[%s5 + $0x100] sm:$0xff]
    %v1270 = vld [vmem:[%s5 + $0x108] sm:$0xff]
    %v1271 = vld [vmem:[%s5 + $0x110] sm:$0xff]
    %v1272 = vld [vmem:[%s5 + $0x118] sm:$0xff]
    %v1273 = vld [vmem:[%s5 + $0x120] sm:$0xff]
    %v1274 = vld [vmem:[%s5 + $0x128] sm:$0xff]
    %v1275 = vld [vmem:[%s5 + $0x130] sm:$0xff]
    %v1276 = vld [vmem:[%s5 + $0x138] sm:$0xff]
    %v1277 = vld [vmem:[%s5 + $0x140] sm:$0xff]
    %v1278 = vld [vmem:[%s5 + $0x148] sm:$0xff]
    %v1279 = vld [vmem:[%s5 + $0x150] sm:$0xff]
    %v1280 = vld [vmem:[%s5 + $0x158] sm:$0xff]
    %v1281 = vld [vmem:[%s5 + $0x160] sm:$0xff]
    %v1282 = vld [vmem:[%s5 + $0x168] sm:$0xff]
    %v1283 = vld [vmem:[%s5 + $0x170] sm:$0xff]
    %v1284 = vld [vmem:[%s5 + $0x178] sm:$0xff]
    %v1285 = vld [vmem:[%s5 + $0x180] sm:$0xff]
    %v1286 = vld [vmem:[%s5 + $0x188] sm:$0xff]
    %v1287 = vld [vmem:[%s5 + $0x190] sm:$0xff]
    %v1288 = vld [vmem:[%s5 + $0x198] sm:$0xff]
    %v1289 = vld [vmem:[%s5 + $0x1a0] sm:$0xff]
    %v1290 = vld [vmem:[%s5 + $0x1a8] sm:$0xff]
    %v1291 = vld [vmem:[%s5 + $0x1b0] sm:$0xff]
    %v1292 = vld [vmem:[%s5 + $0x1b8] sm:$0xff]
    %v1293 = vld [vmem:[%s5 + $0x1c0] sm:$0xff]
    %v1294 = vld [vmem:[%s5 + $0x1c8] sm:$0xff]
    %v1295 = vld [vmem:[%s5 + $0x1d0] sm:$0xff]
    %v1296 = vld [vmem:[%s5 + $0x1d8] sm:$0xff]
    %v1297 = vld [vmem:[%s5 + $0x1e0] sm:$0xff]
    %v1298 = vld [vmem:[%s5 + $0x1e8] sm:$0xff]
    %v1299 = vld [vmem:[%s5 + $0x1f0] sm:$0xff]
    %v1300 = vld [vmem:[%s5 + $0x1f8] sm:$0xff]
    %1301 = vmatprep.subr.mxu0 0.0
    %1302 = vmatpush1.msra.mxu0 %v1237
    %1303 = vmatprep.subr.mxu0 0.0
    %1304 = vmatpush1.msra.mxu0 %v1238
    %1305 = vmatprep.subr.mxu0 0.0
    %1306 = vmatpush1.msra.mxu0 %v1239
    %1307 = vmatprep.subr.mxu0 0.0
    %1308 = vmatpush1.msra.mxu0 %v1240
    %1309 = vmatprep.subr.mxu0 0.0
    %1310 = vmatpush1.msra.mxu0 %v1241
    %1311 = vmatprep.subr.mxu0 0.0
    %1312 = vmatpush1.msra.mxu0 %v1242
    %1313 = vmatprep.subr.mxu0 0.0
    %1314 = vmatpush1.msra.mxu0 %v1243
    %1315 = vmatprep.subr.mxu0 0.0
    %1316 = vmatpush1.msra.mxu0 %v1244
    %1317 = vmatprep.subr.mxu0 0.0
    %1318 = vmatpush1.msra.mxu0 %v1245
    %1319 = vmatprep.subr.mxu0 0.0
    %1320 = vmatpush1.msra.mxu0 %v1246
    %1321 = vmatprep.subr.mxu0 0.0
    %1322 = vmatpush1.msra.mxu0 %v1247
    %1323 = vmatprep.subr.mxu0 0.0
    %1324 = vmatpush1.msra.mxu0 %v1248
    %1325 = vmatprep.subr.mxu0 0.0
    %1326 = vmatpush1.msra.mxu0 %v1249
    %1327 = vmatprep.subr.mxu0 0.0
    %1328 = vmatpush1.msra.mxu0 %v1250
    %1329 = vmatprep.subr.mxu0 0.0
    %1330 = vmatpush1.msra.mxu0 %v1251
    %1331 = vmatprep.subr.mxu0 0.0
    %1332 = vmatpush1.msra.mxu0 %v1252
    %1333 = vmatprep.subr.mxu0 0.0
    %1334 = vmatpush1.msra.mxu0 %v1253
    %1335 = vmatprep.subr.mxu0 0.0
    %1336 = vmatpush1.msra.mxu0 %v1254
    %1337 = vmatprep.subr.mxu0 0.0
    %1338 = vmatpush1.msra.mxu0 %v1255
    %1339 = vmatprep.subr.mxu0 0.0
    %1340 = vmatpush1.msra.mxu0 %v1256
    %1341 = vmatprep.subr.mxu0 0.0
    %1342 = vmatpush1.msra.mxu0 %v1257
    %1343 = vmatprep.subr.mxu0 0.0
    %1344 = vmatpush1.msra.mxu0 %v1258
    %1345 = vmatprep.subr.mxu0 0.0
    %1346 = vmatpush1.msra.mxu0 %v1259
    %1347 = vmatprep.subr.mxu0 0.0
    %1348 = vmatpush1.msra.mxu0 %v1260
    %1349 = vmatprep.subr.mxu0 0.0
    %1350 = vmatpush1.msra.mxu0 %v1261
    %1351 = vmatprep.subr.mxu0 0.0
    %1352 = vmatpush1.msra.mxu0 %v1262
    %1353 = vmatprep.subr.mxu0 0.0
    %1354 = vmatpush1.msra.mxu0 %v1263
    %1355 = vmatprep.subr.mxu0 0.0
    %1356 = vmatpush1.msra.mxu0 %v1264
    %1357 = vmatprep.subr.mxu0 0.0
    %1358 = vmatpush1.msra.mxu0 %v1265
    %1359 = vmatprep.subr.mxu0 0.0
    %1360 = vmatpush1.msra.mxu0 %v1266
    %1361 = vmatprep.subr.mxu0 0.0
    %1362 = vmatpush1.msra.mxu0 %v1267
    %1363 = vmatprep.subr.mxu0 0.0
    %1364 = vmatpush1.msra.mxu0 %v1268
    %1365 = vmatprep.mubr.f32.mxu0 %v1222
    %1366 = vmatmul.mubr.f32.gmra.mrb[0].mxu0 %v1215
    %v1367 = vpop.f32.mrb[0].mxu0
    %v1368 = vadd.f32 0.0, %v1367
    %v1369 = vpop.f32.mrb[0].mxu0
    %1370 = vdwg.mxu0
    %1371 = vmatprep.subr.mxu0 0.0
    %1372 = vmatpush1.msra.mxu0 %v1269
    %1373 = vmatprep.subr.mxu0 0.0
    %1374 = vmatpush1.msra.mxu0 %v1270
    %1375 = vmatprep.subr.mxu0 0.0
    %1376 = vmatpush1.msra.mxu0 %v1271
    %1377 = vmatprep.subr.mxu0 0.0
    %1378 = vmatpush1.msra.mxu0 %v1272
    %1379 = vmatprep.subr.mxu0 0.0
    %1380 = vmatpush1.msra.mxu0 %v1273
    %1381 = vmatprep.subr.mxu0 0.0
    %1382 = vmatpush1.msra.mxu0 %v1274
    %1383 = vmatprep.subr.mxu0 0.0
    %1384 = vmatpush1.msra.mxu0 %v1275
    %1385 = vmatprep.subr.mxu0 0.0
    %1386 = vmatpush1.msra.mxu0 %v1276
    %1387 = vmatprep.subr.mxu0 0.0
    %1388 = vmatpush1.msra.mxu0 %v1277
    %1389 = vmatprep.subr.mxu0 0.0
    %1390 = vmatpush1.msra.mxu0 %v1278
    %1391 = vmatprep.subr.mxu0 0.0
    %1392 = vmatpush1.msra.mxu0 %v1279
    %1393 = vmatprep.subr.mxu0 0.0
    %1394 = vmatpush1.msra.mxu0 %v1280
    %1395 = vmatprep.subr.mxu0 0.0
    %1396 = vmatpush1.msra.mxu0 %v1281
    %1397 = vmatprep.subr.mxu0 0.0
    %1398 = vmatpush1.msra.mxu0 %v1282
    %1399 = vmatprep.subr.mxu0 0.0
    %1400 = vmatpush1.msra.mxu0 %v1283
    %1401 = vmatprep.subr.mxu0 0.0
    %1402 = vmatpush1.msra.mxu0 %v1284
    %1403 = vmatprep.subr.mxu0 0.0
    %1404 = vmatpush1.msra.mxu0 %v1285
    %1405 = vmatprep.subr.mxu0 0.0
    %1406 = vmatpush1.msra.mxu0 %v1286
    %1407 = vmatprep.subr.mxu0 0.0
    %1408 = vmatpush1.msra.mxu0 %v1287
    %1409 = vmatprep.subr.mxu0 0.0
    %1410 = vmatpush1.msra.mxu0 %v1288
    %1411 = vmatprep.subr.mxu0 0.0
    %1412 = vmatpush1.msra.mxu0 %v1289
    %1413 = vmatprep.subr.mxu0 0.0
    %1414 = vmatpush1.msra.mxu0 %v1290
    %1415 = vmatprep.subr.mxu0 0.0
    %1416 = vmatpush1.msra.mxu0 %v1291
    %1417 = vmatprep.subr.mxu0 0.0
    %1418 = vmatpush1.msra.mxu0 %v1292
    %1419 = vmatprep.subr.mxu0 0.0
    %1420 = vmatpush1.msra.mxu0 %v1293
    %1421 = vmatprep.subr.mxu0 0.0
    %1422 = vmatpush1.msra.mxu0 %v1294
    %1423 = vmatprep.subr.mxu0 0.0
    %1424 = vmatpush1.msra.mxu0 %v1295
    %1425 = vmatprep.subr.mxu0 0.0
    %1426 = vmatpush1.msra.mxu0 %v1296
    %1427 = vmatprep.subr.mxu0 0.0
    %1428 = vmatpush1.msra.mxu0 %v1297
    %1429 = vmatprep.subr.mxu0 0.0
    %1430 = vmatpush1.msra.mxu0 %v1298
    %1431 = vmatprep.subr.mxu0 0.0
    %1432 = vmatpush1.msra.mxu0 %v1299
    %1433 = vmatprep.subr.mxu0 0.0
    %1434 = vmatpush1.msra.mxu0 %v1300
    %1435 = vmatprep.mubr.f32.mxu0 %v1236
    %1436 = vmatmul.mubr.f32.gmra.mrb[0].mxu0 %v1229
    %v1437 = vpop.f32.mrb[0].mxu0
    %v1438 = vadd.f32 %v1368, %v1437
    %v1439 = vpop.f32.mrb[0].mxu0
    %1440 = vdwg.mxu0
    %v1441 = vmul.f32 %v1162, %v1162
    %v1442 = vmul.f32 %v1164, %v1164
    %v1443 = vmul.f32 %v1203, %v1203
    %v1444 = vmul.f32 %v1205, %v1205
    %v1445 = vsel %vm726, %v1441, 0.0
    %v1446 = vrot.slane %v1445, 4
    %v1447 = vadd.f32 %v1445, %v1446
    %v1448 = vrot.slane %v1447, 2
    %v1449 = vadd.f32 %v1447, %v1448
    %v1450 = vrot.slane %v1449, 1
    %v1451 = vadd.f32 %v1449, %v1450
    %v1452 = vsel %vm726, %v1442, 0.0
    %v1453 = vrot.slane %v1452, 4
    %v1454 = vadd.f32 %v1452, %v1453
    %v1455 = vrot.slane %v1454, 2
    %v1456 = vadd.f32 %v1454, %v1455
    %v1457 = vrot.slane %v1456, 1
    %v1458 = vadd.f32 %v1456, %v1457
    %v1459 = vsel %vm726, %v1443, 0.0
    %v1460 = vrot.slane %v1459, 4
    %v1461 = vadd.f32 %v1459, %v1460
    %v1462 = vrot.slane %v1461, 2
    %v1463 = vadd.f32 %v1461, %v1462
    %v1464 = vrot.slane %v1463, 1
    %v1465 = vadd.f32 %v1463, %v1464
    %v1466 = vsel %vm726, %v1444, 0.0
    %v1467 = vrot.slane %v1466, 4
    %v1468 = vadd.f32 %v1466, %v1467
    %v1469 = vrot.slane %v1468, 2
    %v1470 = vadd.f32 %v1468, %v1469
    %v1471 = vrot.slane %v1470, 1
    %v1472 = vadd.f32 %v1470, %v1471
    %1473 = vmatprep.subr.mxu0 0.0
    %1474 = vmatpush1.msra.mxu0 %v1237
    %1475 = vmatprep.subr.mxu0 0.0
    %1476 = vmatpush1.msra.mxu0 %v1238
    %1477 = vmatprep.subr.mxu0 0.0
    %1478 = vmatpush1.msra.mxu0 %v1239
    %1479 = vmatprep.subr.mxu0 0.0
    %1480 = vmatpush1.msra.mxu0 %v1240
    %1481 = vmatprep.subr.mxu0 0.0
    %1482 = vmatpush1.msra.mxu0 %v1241
    %1483 = vmatprep.subr.mxu0 0.0
    %1484 = vmatpush1.msra.mxu0 %v1242
    %1485 = vmatprep.subr.mxu0 0.0
    %1486 = vmatpush1.msra.mxu0 %v1243
    %1487 = vmatprep.subr.mxu0 0.0
    %1488 = vmatpush1.msra.mxu0 %v1244
    %1489 = vmatprep.subr.mxu0 0.0
    %1490 = vmatpush1.msra.mxu0 %v1245
    %1491 = vmatprep.subr.mxu0 0.0
    %1492 = vmatpush1.msra.mxu0 %v1246
    %1493 = vmatprep.subr.mxu0 0.0
    %1494 = vmatpush1.msra.mxu0 %v1247
    %1495 = vmatprep.subr.mxu0 0.0
    %1496 = vmatpush1.msra.mxu0 %v1248
    %1497 = vmatprep.subr.mxu0 0.0
    %1498 = vmatpush1.msra.mxu0 %v1249
    %1499 = vmatprep.subr.mxu0 0.0
    %1500 = vmatpush1.msra.mxu0 %v1250
    %1501 = vmatprep.subr.mxu0 0.0
    %1502 = vmatpush1.msra.mxu0 %v1251
    %1503 = vmatprep.subr.mxu0 0.0
    %1504 = vmatpush1.msra.mxu0 %v1252
    %1505 = vmatprep.subr.mxu0 0.0
    %1506 = vmatpush1.msra.mxu0 %v1253
    %1507 = vmatprep.subr.mxu0 0.0
    %1508 = vmatpush1.msra.mxu0 %v1254
    %1509 = vmatprep.subr.mxu0 0.0
    %1510 = vmatpush1.msra.mxu0 %v1255
    %1511 = vmatprep.subr.mxu0 0.0
    %1512 = vmatpush1.msra.mxu0 %v1256
    %1513 = vmatprep.subr.mxu0 0.0
    %1514 = vmatpush1.msra.mxu0 %v1257
    %1515 = vmatprep.subr.mxu0 0.0
    %1516 = vmatpush1.msra.mxu0 %v1258
    %1517 = vmatprep.subr.mxu0 0.0
    %1518 = vmatpush1.msra.mxu0 %v1259
    %1519 = vmatprep.subr.mxu0 0.0
    %1520 = vmatpush1.msra.mxu0 %v1260
    %1521 = vmatprep.subr.mxu0 0.0
    %1522 = vmatpush1.msra.mxu0 %v1261
    %1523 = vmatprep.subr.mxu0 0.0
    %1524 = vmatpush1.msra.mxu0 %v1262
    %1525 = vmatprep.subr.mxu0 0.0
    %1526 = vmatpush1.msra.mxu0 %v1263
    %1527 = vmatprep.subr.mxu0 0.0
    %1528 = vmatpush1.msra.mxu0 %v1264
    %1529 = vmatprep.subr.mxu0 0.0
    %1530 = vmatpush1.msra.mxu0 %v1265
    %1531 = vmatprep.subr.mxu0 0.0
    %1532 = vmatpush1.msra.mxu0 %v1266
    %1533 = vmatprep.subr.mxu0 0.0
    %1534 = vmatpush1.msra.mxu0 %v1267
    %1535 = vmatprep.subr.mxu0 0.0
    %1536 = vmatpush1.msra.mxu0 %v1268
    %1537 = vmatprep.mubr.f32.mxu0 %v1458
    %1538 = vmatmul.mubr.f32.gmra.mrb[0].mxu0 %v1451
    %v1539 = vpop.f32.mrb[0].mxu0
    %v1540 = vadd.f32 0.0, %v1539
    %v1541 = vpop.f32.mrb[0].mxu0
    %1542 = vdwg.mxu0
    %1543 = vmatprep.subr.mxu0 0.0
    %1544 = vmatpush1.msra.mxu0 %v1269
    %1545 = vmatprep.subr.mxu0 0.0
    %1546 = vmatpush1.msra.mxu0 %v1270
    %1547 = vmatprep.subr.mxu0 0.0
    %1548 = vmatpush1.msra.mxu0 %v1271
    %1549 = vmatprep.subr.mxu0 0.0
    %1550 = vmatpush1.msra.mxu0 %v1272
    %1551 = vmatprep.subr.mxu0 0.0
    %1552 = vmatpush1.msra.mxu0 %v1273
    %1553 = vmatprep.subr.mxu0 0.0
    %1554 = vmatpush1.msra.mxu0 %v1274
    %1555 = vmatprep.subr.mxu0 0.0
    %1556 = vmatpush1.msra.mxu0 %v1275
    %1557 = vmatprep.subr.mxu0 0.0
    %1558 = vmatpush1.msra.mxu0 %v1276
    %1559 = vmatprep.subr.mxu0 0.0
    %1560 = vmatpush1.msra.mxu0 %v1277
    %1561 = vmatprep.subr.mxu0 0.0
    %1562 = vmatpush1.msra.mxu0 %v1278
    %1563 = vmatprep.subr.mxu0 0.0
    %1564 = vmatpush1.msra.mxu0 %v1279
    %1565 = vmatprep.subr.mxu0 0.0
    %1566 = vmatpush1.msra.mxu0 %v1280
    %1567 = vmatprep.subr.mxu0 0.0
    %1568 = vmatpush1.msra.mxu0 %v1281
    %1569 = vmatprep.subr.mxu0 0.0
    %1570 = vmatpush1.msra.mxu0 %v1282
    %1571 = vmatprep.subr.mxu0 0.0
    %1572 = vmatpush1.msra.mxu0 %v1283
    %1573 = vmatprep.subr.mxu0 0.0
    %1574 = vmatpush1.msra.mxu0 %v1284
    %1575 = vmatprep.subr.mxu0 0.0
    %1576 = vmatpush1.msra.mxu0 %v1285
    %1577 = vmatprep.subr.mxu0 0.0
    %1578 = vmatpush1.msra.mxu0 %v1286
    %1579 = vmatprep.subr.mxu0 0.0
    %1580 = vmatpush1.msra.mxu0 %v1287
    %1581 = vmatprep.subr.mxu0 0.0
    %1582 = vmatpush1.msra.mxu0 %v1288
    %1583 = vmatprep.subr.mxu0 0.0
    %1584 = vmatpush1.msra.mxu0 %v1289
    %1585 = vmatprep.subr.mxu0 0.0
    %1586 = vmatpush1.msra.mxu0 %v1290
    %1587 = vmatprep.subr.mxu0 0.0
    %1588 = vmatpush1.msra.mxu0 %v1291
    %1589 = vmatprep.subr.mxu0 0.0
    %1590 = vmatpush1.msra.mxu0 %v1292
    %1591 = vmatprep.subr.mxu0 0.0
    %1592 = vmatpush1.msra.mxu0 %v1293
    %1593 = vmatprep.subr.mxu0 0.0
    %1594 = vmatpush1.msra.mxu0 %v1294
    %1595 = vmatprep.subr.mxu0 0.0
    %1596 = vmatpush1.msra.mxu0 %v1295
    %1597 = vmatprep.subr.mxu0 0.0
    %1598 = vmatpush1.msra.mxu0 %v1296
    %1599 = vmatprep.subr.mxu0 0.0
    %1600 = vmatpush1.msra.mxu0 %v1297
    %1601 = vmatprep.subr.mxu0 0.0
    %1602 = vmatpush1.msra.mxu0 %v1298
    %1603 = vmatprep.subr.mxu0 0.0
    %1604 = vmatpush1.msra.mxu0 %v1299
    %1605 = vmatprep.subr.mxu0 0.0
    %1606 = vmatpush1.msra.mxu0 %v1300
    %1607 = vmatprep.mubr.f32.mxu0 %v1472
    %1608 = vmatmul.mubr.f32.gmra.mrb[0].mxu0 %v1465
    %v1609 = vpop.f32.mrb[0].mxu0
    %v1610 = vadd.f32 %v1540, %v1609
    %v1611 = vpop.f32.mrb[0].mxu0
    %1612 = vdwg.mxu0
    %v1613 = vstv %s667
    %v1614 = vmul.f32 %v1438, %v1613
    %v1615 = vmul.f32 %v1610, %v1613
    %v1616 = vmul.f32 %v1614, %v1614
    %v1617 = vsub.f32 %v1615, %v1616
    %v1618 = vmax.f32 %v1617, 0.0
    %v1619 = vld [vmem:[#allocation9 + $0x21] ss:$0 sm:$0xff]
    %v1620 = vadd.f32 %v1618, 1e-05
    %v1621 = vrsqrt.pop %v1620
    %v1622 = vmul.f32 %v1619, %v1621
    %v1623 = vld [vmem:[#allocation9 + $0x22] ss:$0 sm:$0xff]
    %v1624 = vmul.f32 %v1614, %v1622
    %v1625 = vsub.f32 %v1623, %v1624
    %v1626 = vld [vmem:[%s6] sm:$0xff]
    %v1627 = vld [vmem:[%s6 + $0x8] sm:$0xff]
    %v1628 = vld [vmem:[%s6 + $0x10] sm:$0xff]
    %v1629 = vld [vmem:[%s6 + $0x18] sm:$0xff]
    %vm1630 = vcmask 64512
    %v1632 = vsel %vm1630, %v1622, 0
    %1634 = vmatprep.subr.mxu0 %v1627
    %1635 = vmatpush1.msra.mxu0 %v1626
    %1636 = vmatprep.subr.mxu0 0.0
    %1637 = vmatpush1.msra.mxu0 0.0
    %1638 = vmatprep.subr.mxu0 0.0
    %1639 = vmatpush1.msra.mxu0 0.0
    %1640 = vmatprep.subr.mxu0 0.0
    %1641 = vmatpush1.msra.mxu0 0.0
    %1642 = vmatprep.subr.mxu0 0.0
    %1643 = vmatpush1.msra.mxu0 0.0
    %1644 = vmatprep.subr.mxu0 0.0
    %1645 = vmatpush1.msra.mxu0 0.0
    %1646 = vmatprep.subr.mxu0 0.0
    %1647 = vmatpush1.msra.mxu0 0.0
    %1648 = vmatprep.subr.mxu0 0.0
    %1649 = vmatpush1.msra.mxu0 0.0
    %1650 = vmatprep.subr.mxu0 0.0
    %1651 = vmatpush1.msra.mxu0 0.0
    %1652 = vmatprep.subr.mxu0 0.0
    %1653 = vmatpush1.msra.mxu0 0.0
    %1654 = vmatprep.subr.mxu0 0.0
    %1655 = vmatpush1.msra.mxu0 0.0
    %1656 = vmatprep.subr.mxu0 0.0
    %1657 = vmatpush1.msra.mxu0 0.0
    %1658 = vmatprep.subr.mxu0 0.0
    %1659 = vmatpush1.msra.mxu0 0.0
    %1660 = vmatprep.subr.mxu0 0.0
    %1661 = vmatpush1.msra.mxu0 0.0
    %1662 = vmatprep.subr.mxu0 0.0
    %1663 = vmatpush1.msra.mxu0 0.0
    %1664 = vmatprep.subr.mxu0 0.0
    %1665 = vmatpush1.msra.mxu0 0.0
    %1666 = vmatprep.subr.mxu0 0.0
    %1667 = vmatpush1.msra.mxu0 0.0
    %1668 = vmatprep.subr.mxu0 0.0
    %1669 = vmatpush1.msra.mxu0 0.0
    %1670 = vmatprep.subr.mxu0 0.0
    %1671 = vmatpush1.msra.mxu0 0.0
    %1672 = vmatprep.subr.mxu0 0.0
    %1673 = vmatpush1.msra.mxu0 0.0
    %1674 = vmatprep.subr.mxu0 0.0
    %1675 = vmatpush1.msra.mxu0 0.0
    %1676 = vmatprep.subr.mxu0 0.0
    %1677 = vmatpush1.msra.mxu0 0.0
    %1678 = vmatprep.subr.mxu0 0.0
    %1679 = vmatpush1.msra.mxu0 0.0
    %1680 = vmatprep.subr.mxu0 0.0
    %1681 = vmatpush1.msra.mxu0 0.0
    %1682 = vmatprep.subr.mxu0 0.0
    %1683 = vmatpush1.msra.mxu0 0.0
    %1684 = vmatprep.subr.mxu0 0.0
    %1685 = vmatpush1.msra.mxu0 0.0
    %1686 = vmatprep.subr.mxu0 0.0
    %1687 = vmatpush1.msra.mxu0 0.0
    %1688 = vmatprep.subr.mxu0 0.0
    %1689 = vmatpush1.msra.mxu0 0.0
    %1690 = vmatprep.subr.mxu0 0.0
    %1691 = vmatpush1.msra.mxu0 0.0
    %1692 = vmatprep.subr.mxu0 0.0
    %1693 = vmatpush1.msra.mxu0 0.0
    %1694 = vmatprep.subr.mxu0 0.0
    %1695 = vmatpush1.msra.mxu0 0.0
    %1696 = vmatprep.subr.mxu0 0.0
    %1697 = vmatpush1.msra.mxu0 0.0
    %1698 = vmatprep.mubr.f32.mxu0 0.0
    %1699 = vmatmul.mubr.f32.gmra.mrb[0].mxu0 %v1632
    %v1700 = vpop.f32.mrb[0].mxu0
    %v1701 = vadd.f32 0.0, %v1700
    %v1702 = vpop.f32.mrb[0].mxu0
    %v1703 = vadd.f32 0.0, %v1702
    %1704 = vdwg.mxu0
    %1705 = vmatprep.subr.mxu0 %v1629
    %1706 = vmatpush1.msra.mxu0 %v1628
    %1707 = vmatprep.subr.mxu0 0.0
    %1708 = vmatpush1.msra.mxu0 0.0
    %1709 = vmatprep.subr.mxu0 0.0
    %1710 = vmatpush1.msra.mxu0 0.0
    %1711 = vmatprep.subr.mxu0 0.0
    %1712 = vmatpush1.msra.mxu0 0.0
    %1713 = vmatprep.subr.mxu0 0.0
    %1714 = vmatpush1.msra.mxu0 0.0
    %1715 = vmatprep.subr.mxu0 0.0
    %1716 = vmatpush1.msra.mxu0 0.0
    %1717 = vmatprep.subr.mxu0 0.0
    %1718 = vmatpush1.msra.mxu0 0.0
    %1719 = vmatprep.subr.mxu0 0.0
    %1720 = vmatpush1.msra.mxu0 0.0
    %1721 = vmatprep.subr.mxu0 0.0
    %1722 = vmatpush1.msra.mxu0 0.0
    %1723 = vmatprep.subr.mxu0 0.0
    %1724 = vmatpush1.msra.mxu0 0.0
    %1725 = vmatprep.subr.mxu0 0.0
    %1726 = vmatpush1.msra.mxu0 0.0
    %1727 = vmatprep.subr.mxu0 0.0
    %1728 = vmatpush1.msra.mxu0 0.0
    %1729 = vmatprep.subr.mxu0 0.0
    %1730 = vmatpush1.msra.mxu0 0.0
    %1731 = vmatprep.subr.mxu0 0.0
    %1732 = vmatpush1.msra.mxu0 0.0
    %1733 = vmatprep.subr.mxu0 0.0
    %1734 = vmatpush1.msra.mxu0 0.0
    %1735 = vmatprep.subr.mxu0 0.0
    %1736 = vmatpush1.msra.mxu0 0.0
    %1737 = vmatprep.subr.mxu0 0.0
    %1738 = vmatpush1.msra.mxu0 0.0
    %1739 = vmatprep.subr.mxu0 0.0
    %1740 = vmatpush1.msra.mxu0 0.0
    %1741 = vmatprep.subr.mxu0 0.0
    %1742 = vmatpush1.msra.mxu0 0.0
    %1743 = vmatprep.subr.mxu0 0.0
    %1744 = vmatpush1.msra.mxu0 0.0
    %1745 = vmatprep.subr.mxu0 0.0
    %1746 = vmatpush1.msra.mxu0 0.0
    %1747 = vmatprep.subr.mxu0 0.0
    %1748 = vmatpush1.msra.mxu0 0.0
    %1749 = vmatprep.subr.mxu0 0.0
    %1750 = vmatpush1.msra.mxu0 0.0
    %1751 = vmatprep.subr.mxu0 0.0
    %1752 = vmatpush1.msra.mxu0 0.0
    %1753 = vmatprep.subr.mxu0 0.0
    %1754 = vmatpush1.msra.mxu0 0.0
    %1755 = vmatprep.subr.mxu0 0.0
    %1756 = vmatpush1.msra.mxu0 0.0
    %1757 = vmatprep.subr.mxu0 0.0
    %1758 = vmatpush1.msra.mxu0 0.0
    %1759 = vmatprep.subr.mxu0 0.0
    %1760 = vmatpush1.msra.mxu0 0.0
    %1761 = vmatprep.subr.mxu0 0.0
    %1762 = vmatpush1.msra.mxu0 0.0
    %1763 = vmatprep.subr.mxu0 0.0
    %1764 = vmatpush1.msra.mxu0 0.0
    %1765 = vmatprep.subr.mxu0 0.0
    %1766 = vmatpush1.msra.mxu0 0.0
    %1767 = vmatprep.subr.mxu0 0.0
    %1768 = vmatpush1.msra.mxu0 0.0
    %1769 = vmatprep.mubr.f32.mxu0 0.0
    %1770 = vmatmul.mubr.f32.gmra.mrb[0].mxu0 %v1632
    %v1771 = vpop.f32.mrb[0].mxu0
    %v1772 = vadd.f32 0.0, %v1771
    %v1773 = vpop.f32.mrb[0].mxu0
    %v1774 = vadd.f32 0.0, %v1773
    %1775 = vdwg.mxu0
    %v1777 = vsel %vm1630, %v1625, 0
    %1779 = vmatprep.subr.mxu0 %v1627
    %1780 = vmatpush1.msra.mxu0 %v1626
    %1781 = vmatprep.subr.mxu0 0.0
    %1782 = vmatpush1.msra.mxu0 0.0
    %1783 = vmatprep.subr.mxu0 0.0
    %1784 = vmatpush1.msra.mxu0 0.0
    %1785 = vmatprep.subr.mxu0 0.0
    %1786 = vmatpush1.msra.mxu0 0.0
    %1787 = vmatprep.subr.mxu0 0.0
    %1788 = vmatpush1.msra.mxu0 0.0
    %1789 = vmatprep.subr.mxu0 0.0
    %1790 = vmatpush1.msra.mxu0 0.0
    %1791 = vmatprep.subr.mxu0 0.0
    %1792 = vmatpush1.msra.mxu0 0.0
    %1793 = vmatprep.subr.mxu0 0.0
    %1794 = vmatpush1.msra.mxu0 0.0
    %1795 = vmatprep.subr.mxu0 0.0
    %1796 = vmatpush1.msra.mxu0 0.0
    %1797 = vmatprep.subr.mxu0 0.0
    %1798 = vmatpush1.msra.mxu0 0.0
    %1799 = vmatprep.subr.mxu0 0.0
    %1800 = vmatpush1.msra.mxu0 0.0
    %1801 = vmatprep.subr.mxu0 0.0
    %1802 = vmatpush1.msra.mxu0 0.0
    %1803 = vmatprep.subr.mxu0 0.0
    %1804 = vmatpush1.msra.mxu0 0.0
    %1805 = vmatprep.subr.mxu0 0.0
    %1806 = vmatpush1.msra.mxu0 0.0
    %1807 = vmatprep.subr.mxu0 0.0
    %1808 = vmatpush1.msra.mxu0 0.0
    %1809 = vmatprep.subr.mxu0 0.0
    %1810 = vmatpush1.msra.mxu0 0.0
    %1811 = vmatprep.subr.mxu0 0.0
    %1812 = vmatpush1.msra.mxu0 0.0
    %1813 = vmatprep.subr.mxu0 0.0
    %1814 = vmatpush1.msra.mxu0 0.0
    %1815 = vmatprep.subr.mxu0 0.0
    %1816 = vmatpush1.msra.mxu0 0.0
    %1817 = vmatprep.subr.mxu0 0.0
    %1818 = vmatpush1.msra.mxu0 0.0
    %1819 = vmatprep.subr.mxu0 0.0
    %1820 = vmatpush1.msra.mxu0 0.0
    %1821 = vmatprep.subr.mxu0 0.0
    %1822 = vmatpush1.msra.mxu0 0.0
    %1823 = vmatprep.subr.mxu0 0.0
    %1824 = vmatpush1.msra.mxu0 0.0
    %1825 = vmatprep.subr.mxu0 0.0
    %1826 = vmatpush1.msra.mxu0 0.0
    %1827 = vmatprep.subr.mxu0 0.0
    %1828 = vmatpush1.msra.mxu0 0.0
    %1829 = vmatprep.subr.mxu0 0.0
    %1830 = vmatpush1.msra.mxu0 0.0
    %1831 = vmatprep.subr.mxu0 0.0
    %1832 = vmatpush1.msra.mxu0 0.0
    %1833 = vmatprep.subr.mxu0 0.0
    %1834 = vmatpush1.msra.mxu0 0.0
    %1835 = vmatprep.subr.mxu0 0.0
    %1836 = vmatpush1.msra.mxu0 0.0
    %1837 = vmatprep.subr.mxu0 0.0
    %1838 = vmatpush1.msra.mxu0 0.0
    %1839 = vmatprep.subr.mxu0 0.0
    %1840 = vmatpush1.msra.mxu0 0.0
    %1841 = vmatprep.subr.mxu0 0.0
    %1842 = vmatpush1.msra.mxu0 0.0
    %1843 = vmatprep.mubr.f32.mxu0 0.0
    %1844 = vmatmul.mubr.f32.gmra.mrb[0].mxu0 %v1777
    %v1845 = vpop.f32.mrb[0].mxu0
    %v1846 = vadd.f32 0.0, %v1845
    %v1847 = vpop.f32.mrb[0].mxu0
    %v1848 = vadd.f32 0.0, %v1847
    %1849 = vdwg.mxu0
    %1850 = vmatprep.subr.mxu0 %v1629
    %1851 = vmatpush1.msra.mxu0 %v1628
    %1852 = vmatprep.subr.mxu0 0.0
    %1853 = vmatpush1.msra.mxu0 0.0
    %1854 = vmatprep.subr.mxu0 0.0
    %1855 = vmatpush1.msra.mxu0 0.0
    %1856 = vmatprep.subr.mxu0 0.0
    %1857 = vmatpush1.msra.mxu0 0.0
    %1858 = vmatprep.subr.mxu0 0.0
    %1859 = vmatpush1.msra.mxu0 0.0
    %1860 = vmatprep.subr.mxu0 0.0
    %1861 = vmatpush1.msra.mxu0 0.0
    %1862 = vmatprep.subr.mxu0 0.0
    %1863 = vmatpush1.msra.mxu0 0.0
    %1864 = vmatprep.subr.mxu0 0.0
    %1865 = vmatpush1.msra.mxu0 0.0
    %1866 = vmatprep.subr.mxu0 0.0
    %1867 = vmatpush1.msra.mxu0 0.0
    %1868 = vmatprep.subr.mxu0 0.0
    %1869 = vmatpush1.msra.mxu0 0.0
    %1870 = vmatprep.subr.mxu0 0.0
    %1871 = vmatpush1.msra.mxu0 0.0
    %1872 = vmatprep.subr.mxu0 0.0
    %1873 = vmatpush1.msra.mxu0 0.0
    %1874 = vmatprep.subr.mxu0 0.0
    %1875 = vmatpush1.msra.mxu0 0.0
    %1876 = vmatprep.subr.mxu0 0.0
    %1877 = vmatpush1.msra.mxu0 0.0
    %1878 = vmatprep.subr.mxu0 0.0
    %1879 = vmatpush1.msra.mxu0 0.0
    %1880 = vmatprep.subr.mxu0 0.0
    %1881 = vmatpush1.msra.mxu0 0.0
    %1882 = vmatprep.subr.mxu0 0.0
    %1883 = vmatpush1.msra.mxu0 0.0
    %1884 = vmatprep.subr.mxu0 0.0
    %1885 = vmatpush1.msra.mxu0 0.0
    %1886 = vmatprep.subr.mxu0 0.0
    %1887 = vmatpush1.msra.mxu0 0.0
    %1888 = vmatprep.subr.mxu0 0.0
    %1889 = vmatpush1.msra.mxu0 0.0
    %1890 = vmatprep.subr.mxu0 0.0
    %1891 = vmatpush1.msra.mxu0 0.0
    %1892 = vmatprep.subr.mxu0 0.0
    %1893 = vmatpush1.msra.mxu0 0.0
    %1894 = vmatprep.subr.mxu0 0.0
    %1895 = vmatpush1.msra.mxu0 0.0
    %1896 = vmatprep.subr.mxu0 0.0
    %1897 = vmatpush1.msra.mxu0 0.0
    %1898 = vmatprep.subr.mxu0 0.0
    %1899 = vmatpush1.msra.mxu0 0.0
    %1900 = vmatprep.subr.mxu0 0.0
    %1901 = vmatpush1.msra.mxu0 0.0
    %1902 = vmatprep.subr.mxu0 0.0
    %1903 = vmatpush1.msra.mxu0 0.0
    %1904 = vmatprep.subr.mxu0 0.0
    %1905 = vmatpush1.msra.mxu0 0.0
    %1906 = vmatprep.subr.mxu0 0.0
    %1907 = vmatpush1.msra.mxu0 0.0
    %1908 = vmatprep.subr.mxu0 0.0
    %1909 = vmatpush1.msra.mxu0 0.0
    %1910 = vmatprep.subr.mxu0 0.0
    %1911 = vmatpush1.msra.mxu0 0.0
    %1912 = vmatprep.subr.mxu0 0.0
    %1913 = vmatpush1.msra.mxu0 0.0
    %1914 = vmatprep.mubr.f32.mxu0 0.0
    %1915 = vmatmul.mubr.f32.gmra.mrb[0].mxu0 %v1777
    %v1916 = vpop.f32.mrb[0].mxu0
    %v1917 = vadd.f32 0.0, %v1916
    %v1918 = vpop.f32.mrb[0].mxu0
    %v1919 = vadd.f32 0.0, %v1918
    %1920 = vdwg.mxu0
    %v1921 = vlaneseq
    %v1922 = vshrl.u32 %v1921, 7
    %v1923 = vsub.s32 0, %v1922
    %v1924 = vrot.slane %v1701, %v1923
    %v1925 = vlaneseq
    %v1926 = vshrl.u32 %v1925, 7
    %v1927 = vsub.s32 0, %v1926
    %v1928 = vrot.slane %v1703, %v1927
    %v1929 = vlaneseq
    %v1930 = vshrl.u32 %v1929, 7
    %v1931 = vsub.s32 0, %v1930
    %v1932 = vrot.slane %v1772, %v1931
    %v1933 = vlaneseq
    %v1934 = vshrl.u32 %v1933, 7
    %v1935 = vsub.s32 0, %v1934
    %v1936 = vrot.slane %v1774, %v1935
    %v1937 = vmul.f32 %v1162, %v1924
    %v1938 = vmul.f32 %v1164, %v1928
    %v1939 = vmul.f32 %v1203, %v1932
    %v1940 = vmul.f32 %v1205, %v1936
    %v1941 = vlaneseq
    %v1942 = vshrl.u32 %v1941, 7
    %v1943 = vsub.s32 0, %v1942
    %v1944 = vrot.slane %v1846, %v1943
    %v1945 = vlaneseq
    %v1946 = vshrl.u32 %v1945, 7
    %v1947 = vsub.s32 0, %v1946
    %v1948 = vrot.slane %v1848, %v1947
    %v1949 = vlaneseq
    %v1950 = vshrl.u32 %v1949, 7
    %v1951 = vsub.s32 0, %v1950
    %v1952 = vrot.slane %v1917, %v1951
    %v1953 = vlaneseq
    %v1954 = vshrl.u32 %v1953, 7
    %v1955 = vsub.s32 0, %v1954
    %v1956 = vrot.slane %v1919, %v1955
    %v1957 = vadd.f32 %v1937, %v1944
    %v1958 = vadd.f32 %v1938, %v1948
    %v1959 = vadd.f32 %v1939, %v1952
    %v1960 = vadd.f32 %v1940, %v1956
    %v1961 = vmax.f32 %v1957, 0.0
    %v1962 = vmax.f32 %v1958, 0.0
    %v1963 = vmax.f32 %v1959, 0.0
    %v1964 = vmax.f32 %v1960, 0.0
    %s1965 = smul.u32 4, 64
    %s1966 = smul.u32 %s1965, 2
    %s1967 = sshll.u32 %s1966, 4
    %1968 = dma.done %s631, %s1967
    %v1969 = vpack.c.bf16 %v1961, %v1961
    %v1970 = vpack.c.bf16 %v1962, %v1962
    %v1971 = vpack.c.bf16 %v1963, %v1963
    %v1972 = vpack.c.bf16 %v1964, %v1964
    %v1973 = vld [vmem:[#allocation3] sm:$0xff]
    %v1974 = vld [vmem:[#allocation3 + $0x8] sm:$0xff]
    %v1975 = vld [vmem:[#allocation3 + $0x10] sm:$0xff]
    %v1976 = vld [vmem:[#allocation3 + $0x18] sm:$0xff]
    %v1977 = vld [vmem:[#allocation3 + $0x20] sm:$0xff]
    %v1978 = vld [vmem:[#allocation3 + $0x28] sm:$0xff]
    %v1979 = vld [vmem:[#allocation3 + $0x30] sm:$0xff]
    %v1980 = vld [vmem:[#allocation3 + $0x38] sm:$0xff]
    %v1981 = vld [vmem:[#allocation3 + $0x40] sm:$0xff]
    %v1982 = vld [vmem:[#allocation3 + $0x48] sm:$0xff]
    %v1983 = vld [vmem:[#allocation3 + $0x50] sm:$0xff]
    %v1984 = vld [vmem:[#allocation3 + $0x58] sm:$0xff]
    %v1985 = vld [vmem:[#allocation3 + $0x60] sm:$0xff]
    %v1986 = vld [vmem:[#allocation3 + $0x68] sm:$0xff]
    %v1987 = vld [vmem:[#allocation3 + $0x70] sm:$0xff]
    %v1988 = vld [vmem:[#allocation3 + $0x78] sm:$0xff]
    %v1989 = vld [vmem:[#allocation3 + $0x80] sm:$0xff]
    %v1990 = vld [vmem:[#allocation3 + $0x88] sm:$0xff]
    %v1991 = vld [vmem:[#allocation3 + $0x90] sm:$0xff]
    %v1992 = vld [vmem:[#allocation3 + $0x98] sm:$0xff]
    %v1993 = vld [vmem:[#allocation3 + $0xa0] sm:$0xff]
    %v1994 = vld [vmem:[#allocation3 + $0xa8] sm:$0xff]
    %v1995 = vld [vmem:[#allocation3 + $0xb0] sm:$0xff]
    %v1996 = vld [vmem:[#allocation3 + $0xb8] sm:$0xff]
    %v1997 = vld [vmem:[#allocation3 + $0xc0] sm:$0xff]
    %v1998 = vld [vmem:[#allocation3 + $0xc8] sm:$0xff]
    %v1999 = vld [vmem:[#allocation3 + $0xd0] sm:$0xff]
    %v2000 = vld [vmem:[#allocation3 + $0xd8] sm:$0xff]
    %v2001 = vld [vmem:[#allocation3 + $0xe0] sm:$0xff]
    %v2002 = vld [vmem:[#allocation3 + $0xe8] sm:$0xff]
    %v2003 = vld [vmem:[#allocation3 + $0xf0] sm:$0xff]
    %v2004 = vld [vmem:[#allocation3 + $0xf8] sm:$0xff]
    %v2005 = vld [vmem:[#allocation3 + $0x100] sm:$0xff]
    %v2006 = vld [vmem:[#allocation3 + $0x108] sm:$0xff]
    %v2007 = vld [vmem:[#allocation3 + $0x110] sm:$0xff]
    %v2008 = vld [vmem:[#allocation3 + $0x118] sm:$0xff]
    %v2009 = vld [vmem:[#allocation3 + $0x120] sm:$0xff]
    %v2010 = vld [vmem:[#allocation3 + $0x128] sm:$0xff]
    %v2011 = vld [vmem:[#allocation3 + $0x130] sm:$0xff]
    %v2012 = vld [vmem:[#allocation3 + $0x138] sm:$0xff]
    %v2013 = vld [vmem:[#allocation3 + $0x140] sm:$0xff]
    %v2014 = vld [vmem:[#allocation3 + $0x148] sm:$0xff]
    %v2015 = vld [vmem:[#allocation3 + $0x150] sm:$0xff]
    %v2016 = vld [vmem:[#allocation3 + $0x158] sm:$0xff]
    %v2017 = vld [vmem:[#allocation3 + $0x160] sm:$0xff]
    %v2018 = vld [vmem:[#allocation3 + $0x168] sm:$0xff]
    %v2019 = vld [vmem:[#allocation3 + $0x170] sm:$0xff]
    %v2020 = vld [vmem:[#allocation3 + $0x178] sm:$0xff]
    %v2021 = vld [vmem:[#allocation3 + $0x180] sm:$0xff]
    %v2022 = vld [vmem:[#allocation3 + $0x188] sm:$0xff]
    %v2023 = vld [vmem:[#allocation3 + $0x190] sm:$0xff]
    %v2024 = vld [vmem:[#allocation3 + $0x198] sm:$0xff]
    %v2025 = vld [vmem:[#allocation3 + $0x1a0] sm:$0xff]
    %v2026 = vld [vmem:[#allocation3 + $0x1a8] sm:$0xff]
    %v2027 = vld [vmem:[#allocation3 + $0x1b0] sm:$0xff]
    %v2028 = vld [vmem:[#allocation3 + $0x1b8] sm:$0xff]
    %v2029 = vld [vmem:[#allocation3 + $0x1c0] sm:$0xff]
    %v2030 = vld [vmem:[#allocation3 + $0x1c8] sm:$0xff]
    %v2031 = vld [vmem:[#allocation3 + $0x1d0] sm:$0xff]
    %v2032 = vld [vmem:[#allocation3 + $0x1d8] sm:$0xff]
    %v2033 = vld [vmem:[#allocation3 + $0x1e0] sm:$0xff]
    %v2034 = vld [vmem:[#allocation3 + $0x1e8] sm:$0xff]
    %v2035 = vld [vmem:[#allocation3 + $0x1f0] sm:$0xff]
    %v2036 = vld [vmem:[#allocation3 + $0x1f8] sm:$0xff]
    %s2037 = scalar_lea.vmem [#allocation9], 32
    %v2038 = vld [vmem:[%s2037] ss:$8 sm:$0x3]
    %v2040 = vlaneseq
    %v2041 = vshrl.u32 %v2040, 7
    %v2042 = vsub.s32 0, %v2041
    %v2043 = vrot.slane %v2038, %v2042
    %v2044 = vlaneseq
    %v2045 = vshrl.u32 %v2044, 7
    %v2046 = vsub.s32 1, %v2045
    %v2047 = vrot.slane %v2038, %v2046
    %2050 = vmatprep.subr.bf16.mxu0 %v1974
    %2051 = vmatpush1.bf16.msra.mxu0 %v1973
    %2052 = vmatprep.subr.bf16.mxu0 %v1976
    %2053 = vmatpush1.bf16.msra.mxu0 %v1975
    %2054 = vmatprep.subr.bf16.mxu0 %v1978
    %2055 = vmatpush1.bf16.msra.mxu0 %v1977
    %2056 = vmatprep.subr.bf16.mxu0 %v1980
    %2057 = vmatpush1.bf16.msra.mxu0 %v1979
    %2058 = vmatprep.subr.bf16.mxu0 %v1982
    %2059 = vmatpush1.bf16.msra.mxu0 %v1981
    %2060 = vmatprep.subr.bf16.mxu0 %v1984
    %2061 = vmatpush1.bf16.msra.mxu0 %v1983
    %2062 = vmatprep.subr.bf16.mxu0 %v1986
    %2063 = vmatpush1.bf16.msra.mxu0 %v1985
    %2064 = vmatprep.subr.bf16.mxu0 %v1988
    %2065 = vmatpush1.bf16.msra.mxu0 %v1987
    %2066 = vmatprep.subr.bf16.mxu0 %v1990
    %2067 = vmatpush1.bf16.msra.mxu0 %v1989
    %2068 = vmatprep.subr.bf16.mxu0 %v1992
    %2069 = vmatpush1.bf16.msra.mxu0 %v1991
    %2070 = vmatprep.subr.bf16.mxu0 %v1994
    %2071 = vmatpush1.bf16.msra.mxu0 %v1993
    %2072 = vmatprep.subr.bf16.mxu0 %v1996
    %2073 = vmatpush1.bf16.msra.mxu0 %v1995
    %2074 = vmatprep.subr.bf16.mxu0 %v1998
    %2075 = vmatpush1.bf16.msra.mxu0 %v1997
    %2076 = vmatprep.subr.bf16.mxu0 %v2000
    %2077 = vmatpush1.bf16.msra.mxu0 %v1999
    %2078 = vmatprep.subr.bf16.mxu0 %v2002
    %2079 = vmatpush1.bf16.msra.mxu0 %v2001
    %2080 = vmatprep.subr.bf16.mxu0 %v2004
    %2081 = vmatpush1.bf16.msra.mxu0 %v2003
    %2082 = vmatprep.mubr.bf16.mxu0 %v1970
    %2083 = vmatmul.mubr.bf16.gmra.mrb[0].mxu0 %v1969
    %v2084 = vpop.f32.mrb[0].mxu0
    %v2085 = vadd.f32 %v2043, %v2084
    %v2086 = vpop.f32.mrb[0].mxu0
    %v2087 = vadd.f32 %v2047, %v2086
    %v2088 = vpop.f32.mrb[0].mxu0
    %v2089 = vpop.f32.mrb[0].mxu0
    %2090 = vdwg.mxu0
    %2091 = vmatprep.subr.bf16.mxu0 %v2006
    %2092 = vmatpush1.bf16.msra.mxu0 %v2005
    %2093 = vmatprep.subr.bf16.mxu0 %v2008
    %2094 = vmatpush1.bf16.msra.mxu0 %v2007
    %2095 = vmatprep.subr.bf16.mxu0 %v2010
    %2096 = vmatpush1.bf16.msra.mxu0 %v2009
    %2097 = vmatprep.subr.bf16.mxu0 %v2012
    %2098 = vmatpush1.bf16.msra.mxu0 %v2011
    %2099 = vmatprep.subr.bf16.mxu0 %v2014
    %2100 = vmatpush1.bf16.msra.mxu0 %v2013
    %2101 = vmatprep.subr.bf16.mxu0 %v2016
    %2102 = vmatpush1.bf16.msra.mxu0 %v2015
    %2103 = vmatprep.subr.bf16.mxu0 %v2018
    %2104 = vmatpush1.bf16.msra.mxu0 %v2017
    %2105 = vmatprep.subr.bf16.mxu0 %v2020
    %2106 = vmatpush1.bf16.msra.mxu0 %v2019
    %2107 = vmatprep.subr.bf16.mxu0 %v2022
    %2108 = vmatpush1.bf16.msra.mxu0 %v2021
    %2109 = vmatprep.subr.bf16.mxu0 %v2024
    %2110 = vmatpush1.bf16.msra.mxu0 %v2023
    %2111 = vmatprep.subr.bf16.mxu0 %v2026
    %2112 = vmatpush1.bf16.msra.mxu0 %v2025
    %2113 = vmatprep.subr.bf16.mxu0 %v2028
    %2114 = vmatpush1.bf16.msra.mxu0 %v2027
    %2115 = vmatprep.subr.bf16.mxu0 %v2030
    %2116 = vmatpush1.bf16.msra.mxu0 %v2029
    %2117 = vmatprep.subr.bf16.mxu0 %v2032
    %2118 = vmatpush1.bf16.msra.mxu0 %v2031
    %2119 = vmatprep.subr.bf16.mxu0 %v2034
    %2120 = vmatpush1.bf16.msra.mxu0 %v2033
    %2121 = vmatprep.subr.bf16.mxu0 %v2036
    %2122 = vmatpush1.bf16.msra.mxu0 %v2035
    %2123 = vmatprep.mubr.bf16.mxu0 %v1972
    %2124 = vmatmul.mubr.bf16.gmra.mrb[0].mxu0 %v1971
    %v2125 = vpop.f32.mrb[0].mxu0
    %v2126 = vadd.f32 %v2085, %v2125
    %v2127 = vpop.f32.mrb[0].mxu0
    %v2128 = vadd.f32 %v2087, %v2127
    %v2129 = vpop.f32.mrb[0].mxu0
    %v2130 = vpop.f32.mrb[0].mxu0
    %2131 = vdwg.mxu0
    %v2132 = vsel %vm726, %v2126, 0.0
    %v2133 = vsel %vm726, %v2128, 0.0
    %v2134 = vadd.f32 %v2132, %v2133
    %2135 = vadd.xlane.f32.xlu0 %v2134
    %v2136 = vpop.xlane.xlu0 %2135
    %v2137 = vsel %vm726, %v2136, 0.0
    %v2138 = vrot.slane %v2137, 4
    %v2139 = vadd.f32 %v2137, %v2138
    %v2140 = vrot.slane %v2139, 2
    %v2141 = vadd.f32 %v2139, %v2140
    %v2142 = vrot.slane %v2141, 1
    %v2143 = vadd.f32 %v2141, %v2142
    %v2144 = vstv %s668
    %v2145 = vmul.f32 %v2143, %v2144
    %v2146 = vmul.f32 %v2126, %v2126
    %v2147 = vmul.f32 %v2128, %v2128
    %v2148 = vsel %vm726, %v2146, 0.0
    %v2149 = vsel %vm726, %v2147, 0.0
    %v2150 = vadd.f32 %v2148, %v2149
    %2151 = vadd.xlane.f32.xlu0 %v2150
    %v2152 = vpop.xlane.xlu0 %2151
    %v2153 = vsel %vm726, %v2152, 0.0
    %v2154 = vrot.slane %v2153, 4
    %v2155 = vadd.f32 %v2153, %v2154
    %v2156 = vrot.slane %v2155, 2
    %v2157 = vadd.f32 %v2155, %v2156
    %v2158 = vrot.slane %v2157, 1
    %v2159 = vadd.f32 %v2157, %v2158
    %v2160 = vmul.f32 %v2159, %v2144
    %v2161 = vmul.f32 %v2145, %v2145
    %v2162 = vsub.f32 %v2160, %v2161
    %v2163 = vmax.f32 %v2162, 0.0
    %v2164 = vadd.f32 %v2163, 1e-05
    %v2165 = vrsqrt.pop %v2164
    %v2166 = vstv %s669
    %v2167 = vmul.f32 %v2166, %v2165
    %v2168 = vmul.f32 %v2145, %v2167
    %v2169 = vstv %s670
    %v2170 = vsub.f32 %v2169, %v2168
    %v2171 = vmul.f32 %v2126, %v2167
    %v2172 = vmul.f32 %v2128, %v2167
    %v2173 = vadd.f32 %v2171, %v2170
    %v2174 = vadd.f32 %v2172, %v2170
    %v2175 = vmax.f32 %v2173, 0.0
    %v2176 = vmax.f32 %v2174, 0.0
    %v2179 = vcombine.low %v2175, %v2176
    %v2181 = vunpack.c.l.s4 1983009808
    %v2182 = vunpack.c.0.s8 %v2181
    %v2183 = vlaneseq
    %v2184 = vshrl.u32 %v2183, 7
    %v2185 = vsub.s32 %v2182, %v2184
    %v2186 = vrot.slane %v2179, %v2185
    %2188 = vst [vmem:[#allocation12] sm:$0xf] %v2186
    // Predicated region
    $region79: #{tpu_custom_call.1} parent=1 // pred_check
      _
    $region80: #{tpu_custom_call.1} parent=1 // pred_check_branch
      %2190 = sbr.rel (0) target = $region82
    $region81: #{tpu_custom_call.1} parent=1 // pred_region
      %s2192 = ssub.s32 64, 64
      %2193 = vsyncadd [#allocation7], %s2192
      %s2195 = sshll.u32 [#allocation12], 4
      %s2196 = int_to_ptr.vmem [resolvable:$true] %s2195
      %2198 = dma.vmem_to_hbm [thread:$0]  %s2196, 64, %s9, [#allocation7]
    $region82: #{tpu_custom_call.1} parent=1 // pred_fallthru
      _
    // Predicated region
    $region83: #{tpu_custom_call.1} parent=1 // pred_check
      _
    $region84: #{tpu_custom_call.1} parent=1 // pred_check_branch
      %2200 = sbr.rel (0) target = $region86
    $region85: #{tpu_custom_call.1} parent=1 // pred_region
      %2201 = dma.done [#allocation7], 64
    $region86: #{tpu_custom_call.1} parent=1 // pred_fallthru
      _
    %2202 = vsyncpa [#allocation6], 1
    %2203 = vsyncpa [#allocation11], 1
    %2204 = vsyncpa [#allocation7], 1
    %2205 = vsyncpa [#allocation8], 1
  %2206 = vsyncmov [#allocation4]
  %s2207 = vpop.sfrf %2206
  %p2208 = scmp.eq.s32.totalorder %s2207, 0
  %p2209 = pneg %p2208
  %2211 = shalt.err (%p2209)
  %s2212 = scalar_lea.sflag [#allocation4], 1
  %2213 = vsyncmov %s2212
  %s2214 = vpop.sfrf %2213
  %p2215 = scmp.eq.s32.totalorder %s2214, 0
  %p2216 = pneg %p2215
  %2218 = shalt.err (%p2216)

</llo_original>
